<compile_context>
chip_gen: v7x
topology: tpu7x:2x2x1
jax: 0.10.0
libtpu: 0.0.40
codegen_flags: <defaults>
</compile_context>

<pallas_src>
import functools

import numpy as np

import jax
import jax.numpy as jnp
from jax.experimental import pallas as pl
from jax.experimental.pallas import tpu as pltpu


def _resblock_kernel(x_ref, halo_ref, w1_ref, b1_ref, w2_ref, b2_ref, out_ref,
                     *, H, W, C, compute_dtype):
    # x_ref    : (1, TH, W, C)   this tile's rows of the input (f32)
    # halo_ref : (1, 4, W, C)    2 rows above + 2 rows below (zeros off-image)
    # w*_ref   : (9*C, C)        folded conv weights (kh, kw, cin) x cout
    # b*_ref   : (1, C)          f32 biases
    # out_ref  : (1, TH, W, C)
    TH = x_ref.shape[1]
    r = pl.program_id(1)
    cd = compute_dtype

    xm = x_ref[0]                                     # (TH, W, C) f32 (residual)
    halo = halo_ref[0].astype(cd)                     # (4, W, C)  matmul dtype

    # Rows [r*TH - 2, r*TH + TH + 2) of the zero-extended image, matmul dtype.
    slab = jnp.concatenate([halo[0:2], xm.astype(cd), halo[2:4]], axis=0)

    def pad_w(a):
        # Zero-pad the W axis by 1 on each side (the conv's padding=1 columns).
        z = jnp.zeros((a.shape[0], 1, C), a.dtype)
        return jnp.concatenate([z, a, z], axis=1)

    def im2col(xpad, hout):
        # xpad: (hout+2, W+2, C) -> (hout*W, 9*C) patch matrix.
        # Only leading dims are merged in the reshape (layout-trivial).
        taps = [xpad[kh:kh + hout, kw:kw + W, :]
                for kh in range(3) for kw in range(3)]
        pat = jnp.concatenate(taps, axis=-1)          # (hout, W, 9C)
        return pat.reshape(hout * W, 9 * C)

    w1 = w1_ref[...]                                  # (9C, C) matmul dtype
    w2 = w2_ref[...]
    b1 = b1_ref[...]                                  # (1, C) f32
    b2 = b2_ref[...]

    # ---- conv1 + bias + ReLU over TH+2 rows (one extra row above/below) -----
    p1 = im2col(pad_w(slab), TH + 2)
    y1 = jnp.maximum(
        jnp.dot(p1, w1, preferred_element_type=jnp.float32) + b1, 0.0
    ).reshape(TH + 2, W, C)

    # Intermediate rows outside [0, H) must be exactly zero: they are the zero
    # padding rows of the second conv (conv1 would give relu(b1) there).
    # Narrow (TH+2, 1) iota — broadcast does the rest.
    row = jax.lax.broadcasted_iota(jnp.int32, (TH + 2, 1), 0)
    grow = r * TH - 1 + row                           # global row of each y1 row
    valid = jnp.logical_and(grow >= 0, grow < H)[:, :, None]   # (TH+2, 1, 1)
    y1 = jnp.where(valid, y1, 0.0)

    # ---- conv2 + bias (cast y1 to the matmul dtype BEFORE pad/im2col) -------
    p2 = im2col(pad_w(y1.astype(cd)), TH)
    y2 = (jnp.dot(p2, w2, preferred_element_type=jnp.float32) + b2
          ).reshape(TH, W, C)

    # ---- residual add + final ReLU (f32) -------------------------------------
    out_ref[0] = jnp.maximum(xm + y2, 0.0).astype(out_ref.dtype)


def _vmem_step_bytes(th, W, C, compute_dtype):
    """Rough per-grid-step VMEM footprint (double-buffered tiles + values)."""
    cdb = jnp.dtype(compute_dtype).itemsize
    lane_c = max(C, 128)                       # lane padding for C-minor buffers
    io = 2 * 2 * th * W * lane_c * 4           # x + out tiles, double-buffered
    halo = 2 * 4 * W * lane_c * 4
    wgt = 2 * 2 * 9 * C * lane_c * cdb
    slab = (th + 4) * (W + 2) * lane_c * cdb
    pats = (2 * th + 2) * W * 9 * C * cdb      # p1 + p2 im2col patches
    y = (3 * th + 4) * W * lane_c * 4          # y1 / y2 / out values (f32)
    return io + halo + wgt + slab + pats + y


def _pick_row_tile(H, W, C, compute_dtype, budget_bytes):
    """Largest row tile (multiple of 8, or the whole image) fitting the budget.

    Small images end up untiled (nT == 1), avoiding per-step overhead and halo
    traffic entirely.
    """
    cands = sorted({t for t in range(8, H + 1, 8) if H % t == 0} | {H},
                   reverse=True)
    for th in cands:
        if _vmem_step_bytes(th, W, C, compute_dtype) <= budget_bytes:
            return th
    return cands[-1]


def residual_block(x, w1, b1, w2, b2, *, compute_dtype=jnp.bfloat16,
                   row_tile=None, data_format="NCHW",
                   vmem_budget_bytes=20 * 1024 * 1024):
    """Pallas ResidualBlock forward.

    x      : (B, C, H, W) f32 if data_format == "NCHW" (PyTorch convention),
             or (B, H, W, C) f32 if data_format == "NHWC" (skips transposes).
    w1, w2 : (C, C, 3, 3) f32  (PyTorch OIHW convention)
    b1, b2 : (C,) f32
    compute_dtype: matmul operand dtype (bf16 default; accumulation is f32).
    vmem_budget_bytes: per-step VMEM budget for row-tile sizing (default 20 MiB
      is safe on v7x's 64 MiB VMEM; v5e/v6e can pass more).
    """
    if data_format == "NCHW":
        B, C, H, W = x.shape
        # TODO(synk): fold this layout change into the kernel via per-channel
        # strided DMA (memory_space=pl.ANY) to remove the extra HBM pass.
        x_nhwc = jnp.transpose(x, (0, 2, 3, 1))
    elif data_format == "NHWC":
        B, H, W, C = x.shape
        x_nhwc = x
    else:
        raise ValueError(f"unknown data_format {data_format!r}")

    TH = (_pick_row_tile(H, W, C, compute_dtype, vmem_budget_bytes)
          if row_tile is None else row_tile)
    assert H % TH == 0, "row tile must divide H"
    nT = H // TH

    # Halo rows per tile: 2 rows above + 2 below, zeros outside the image.
    # Built with one gather + one mask instead of a per-tile Python loop.
    r_idx = np.arange(nT)
    rows = np.stack([r_idx * TH - 2, r_idx * TH - 1,
                     (r_idx + 1) * TH, (r_idx + 1) * TH + 1], axis=1).reshape(-1)
    in_img = (rows >= 0) & (rows < H)
    halos = jnp.take(x_nhwc, jnp.asarray(np.clip(rows, 0, H - 1)), axis=1)
    halos = jnp.where(jnp.asarray(in_img)[None, :, None, None], halos,
                      jnp.zeros((), x_nhwc.dtype))           # (B, nT*4, W, C)

    # OIHW -> (kh, kw, cin, cout) -> fold to (9*C, C); cast to matmul dtype.
    w1k = jnp.transpose(w1, (2, 3, 1, 0)).reshape(9 * C, C).astype(compute_dtype)
    w2k = jnp.transpose(w2, (2, 3, 1, 0)).reshape(9 * C, C).astype(compute_dtype)
    b1k = b1.reshape(1, C).astype(jnp.float32)
    b2k = b2.reshape(1, C).astype(jnp.float32)

    kernel = functools.partial(_resblock_kernel, H=H, W=W, C=C,
                               compute_dtype=compute_dtype)

    cdb = jnp.dtype(compute_dtype).itemsize
    cost = pl.CostEstimate(
        flops=2 * 2 * B * H * W * 9 * C * C,                  # two 3x3 convs
        transcendentals=0,
        bytes_accessed=int(2 * B * H * W * C * 4              # x read + out write
                           + B * nT * 4 * W * C * 4           # halo rows
                           + 2 * 9 * C * C * cdb + 2 * C * 4))
    vmem_limit = int(min(48 * 1024 * 1024,
                         max(32 * 1024 * 1024,
                             2 * _vmem_step_bytes(TH, W, C, compute_dtype))))

    out = pl.pallas_call(
        kernel,
        out_shape=jax.ShapeDtypeStruct((B, H, W, C), x_nhwc.dtype),
        grid=(B, nT),
        in_specs=[
            pl.BlockSpec((1, TH, W, C), lambda b, r: (b, r, 0, 0)),
            pl.BlockSpec((1, 4, W, C), lambda b, r: (b, r, 0, 0)),
            pl.BlockSpec((9 * C, C), lambda b, r: (0, 0)),
            pl.BlockSpec((1, C), lambda b, r: (0, 0)),
            pl.BlockSpec((9 * C, C), lambda b, r: (0, 0)),
            pl.BlockSpec((1, C), lambda b, r: (0, 0)),
        ],
        out_specs=pl.BlockSpec((1, TH, W, C), lambda b, r: (b, r, 0, 0)),
        compiler_params=pltpu.CompilerParams(
            dimension_semantics=("parallel", "parallel"),
            vmem_limit_bytes=vmem_limit),
        cost_estimate=cost,
    )(x_nhwc, halos, w1k, b1k, w2k, b2k)

    if data_format == "NCHW":
        out = jnp.transpose(out, (0, 3, 1, 2))                # back to NCHW
    return out


def _reference(x_nchw, w1, b1, w2, b2):
    # Pure-JAX reference of the PyTorch module (NCHW, OIHW, padding=1).
    dn = ("NCHW", "OIHW", "NCHW")
    y = jax.lax.conv_general_dilated(x_nchw, w1, (1, 1), ((1, 1), (1, 1)),
                                     dimension_numbers=dn)
    y = y + b1[None, :, None, None]
    y = jnp.maximum(y, 0.0)
    y = jax.lax.conv_general_dilated(y, w2, (1, 1), ((1, 1), (1, 1)),
                                     dimension_numbers=dn)
    y = y + b2[None, :, None, None]
    return jnp.maximum(x_nchw + y, 0.0)


if __name__ == "__main__":
    B, C, H, W = 2, 4, 16, 16
    key = jax.random.PRNGKey(0)
    kx, kw1, kb1, kw2, kb2 = jax.random.split(key, 5)

    x = jax.random.normal(kx, (B, C, H, W), dtype=jnp.float32)
    # deterministic synthetic parameters, shapes per nn.Conv2d(C, C, 3, padding=1)
    w1 = jax.random.normal(kw1, (C, C, 3, 3), dtype=jnp.float32) * 0.1
    b1 = jax.random.normal(kb1, (C,), dtype=jnp.float32) * 0.1
    w2 = jax.random.normal(kw2, (C, C, 3, 3), dtype=jnp.float32) * 0.1
    b2 = jax.random.normal(kb2, (C,), dtype=jnp.float32) * 0.1

    ref = _reference(x, w1, b1, w2, b2)

    # f32 matmul path with explicit row tiling (2 row tiles): tight numerical
    # check of the halo / row-masking logic against the XLA reference.
    out_f32 = jax.block_until_ready(
        residual_block(x, w1, b1, w2, b2, compute_dtype=jnp.float32, row_tile=8))
    assert out_f32.shape == (B, C, H, W)
    assert jnp.allclose(out_f32, ref, atol=1e-4, rtol=1e-4), "f32 mismatch vs reference"

    # Default path: bf16 matmul operands, auto (budget-sized) row tile — the
    # small image comes out untiled.  Loose sanity check; tight correctness is
    # established by the f32 run above.
    out_bf16 = jax.block_until_ready(residual_block(x, w1, b1, w2, b2))
    assert out_bf16.shape == (B, C, H, W)
    assert jnp.allclose(out_bf16, ref, atol=1e-1, rtol=1e-1), "bf16 mismatch vs reference"

    print("KERNEL_OK")
</pallas_src>

<mosaic_0001>
module attributes {stable_mosaic.version = 11 : i64} {
  func.func @_resblock_kernel(%arg0: i32, %arg1: i32, %arg2: memref<1x8x16x4xf32, #tpu.memory_space<vmem>>, %arg3: memref<1x4x16x4xf32, #tpu.memory_space<vmem>>, %arg4: memref<36x4xf32, #tpu.memory_space<vmem>>, %arg5: memref<1x4xf32, #tpu.memory_space<vmem>>, %arg6: memref<36x4xf32, #tpu.memory_space<vmem>>, %arg7: memref<1x4xf32, #tpu.memory_space<vmem>>, %arg8: memref<1x8x16x4xf32, #tpu.memory_space<vmem>>) attributes {dimension_semantics = [#tpu.dimension_semantics<parallel>, #tpu.dimension_semantics<parallel>], iteration_bounds = array<i64: 2, 2>, scalar_prefetch = 0 : i64, scratch_operands = 0 : i64, tpu.core_type = #tpu.core_type<tc>, window_params = [{transform_indices = @transform_0, window_bounds = array<i64: 1, 8, 16, 4>}, {transform_indices = @transform_1, window_bounds = array<i64: 1, 4, 16, 4>}, {pipeline_mode = #tpu.pipeline_mode<synchronous>, transform_indices = @transform_2, window_bounds = array<i64: 36, 4>}, {pipeline_mode = #tpu.pipeline_mode<synchronous>, transform_indices = @transform_3, window_bounds = array<i64: 1, 4>}, {pipeline_mode = #tpu.pipeline_mode<synchronous>, transform_indices = @transform_4, window_bounds = array<i64: 36, 4>}, {pipeline_mode = #tpu.pipeline_mode<synchronous>, transform_indices = @transform_5, window_bounds = array<i64: 1, 4>}, {transform_indices = @transform_6, window_bounds = array<i64: 1, 8, 16, 4>}]} {
    %c0 = arith.constant 0 : index
    %c0_0 = arith.constant 0 : index
    %c0_1 = arith.constant 0 : index
    %c0_2 = arith.constant 0 : index
    %0 = vector.load %arg2[%c0, %c0_0, %c0_1, %c0_2] : memref<1x8x16x4xf32, #tpu.memory_space<vmem>>, vector<1x8x16x4xf32>
    %1 = vector.shape_cast %0 : vector<1x8x16x4xf32> to vector<8x16x4xf32>
    %c0_3 = arith.constant 0 : index
    %c0_4 = arith.constant 0 : index
    %c0_5 = arith.constant 0 : index
    %c0_6 = arith.constant 0 : index
    %2 = vector.load %arg3[%c0_3, %c0_4, %c0_5, %c0_6] : memref<1x4x16x4xf32, #tpu.memory_space<vmem>>, vector<1x4x16x4xf32>
    %3 = vector.shape_cast %2 : vector<1x4x16x4xf32> to vector<4x16x4xf32>
    %4 = vector.extract_strided_slice %3 {offsets = [0, 0, 0], sizes = [2, 16, 4], strides = [1, 1, 1]} : vector<4x16x4xf32> to vector<2x16x4xf32>
    %5 = vector.extract_strided_slice %3 {offsets = [2, 0, 0], sizes = [2, 16, 4], strides = [1, 1, 1]} : vector<4x16x4xf32> to vector<2x16x4xf32>
    %6 = tpu.concatenate %4, %1, %5 in 0 : vector<2x16x4xf32>, vector<8x16x4xf32>, vector<2x16x4xf32> -> vector<12x16x4xf32>
    %c0_7 = arith.constant 0 : index
    %c0_8 = arith.constant 0 : index
    %7 = vector.load %arg4[%c0_7, %c0_8] : memref<36x4xf32, #tpu.memory_space<vmem>>, vector<36x4xf32>
    %c0_9 = arith.constant 0 : index
    %c0_10 = arith.constant 0 : index
    %8 = vector.load %arg6[%c0_9, %c0_10] : memref<36x4xf32, #tpu.memory_space<vmem>>, vector<36x4xf32>
    %c0_11 = arith.constant 0 : index
    %c0_12 = arith.constant 0 : index
    %9 = vector.load %arg5[%c0_11, %c0_12] : memref<1x4xf32, #tpu.memory_space<vmem>>, vector<1x4xf32>
    %c0_13 = arith.constant 0 : index
    %c0_14 = arith.constant 0 : index
    %10 = vector.load %arg7[%c0_13, %c0_14] : memref<1x4xf32, #tpu.memory_space<vmem>>, vector<1x4xf32>
    %cst = arith.constant 0.000000e+00 : f32
    %11 = vector.broadcast %cst : f32 to vector<12x1x4xf32>
    %12 = tpu.concatenate %11, %6, %11 in 1 : vector<12x1x4xf32>, vector<12x16x4xf32>, vector<12x1x4xf32> -> vector<12x18x4xf32>
    %13 = vector.extract_strided_slice %12 {offsets = [0, 0, 0], sizes = [10, 16, 4], strides = [1, 1, 1]} : vector<12x18x4xf32> to vector<10x16x4xf32>
    %14 = vector.extract_strided_slice %12 {offsets = [0, 1, 0], sizes = [10, 16, 4], strides = [1, 1, 1]} : vector<12x18x4xf32> to vector<10x16x4xf32>
    %15 = vector.extract_strided_slice %12 {offsets = [0, 2, 0], sizes = [10, 16, 4], strides = [1, 1, 1]} : vector<12x18x4xf32> to vector<10x16x4xf32>
    %16 = vector.extract_strided_slice %12 {offsets = [1, 0, 0], sizes = [10, 16, 4], strides = [1, 1, 1]} : vector<12x18x4xf32> to vector<10x16x4xf32>
    %17 = vector.extract_strided_slice %12 {offsets = [1, 1, 0], sizes = [10, 16, 4], strides = [1, 1, 1]} : vector<12x18x4xf32> to vector<10x16x4xf32>
    %18 = vector.extract_strided_slice %12 {offsets = [1, 2, 0], sizes = [10, 16, 4], strides = [1, 1, 1]} : vector<12x18x4xf32> to vector<10x16x4xf32>
    %19 = vector.extract_strided_slice %12 {offsets = [2, 0, 0], sizes = [10, 16, 4], strides = [1, 1, 1]} : vector<12x18x4xf32> to vector<10x16x4xf32>
    %20 = vector.extract_strided_slice %12 {offsets = [2, 1, 0], sizes = [10, 16, 4], strides = [1, 1, 1]} : vector<12x18x4xf32> to vector<10x16x4xf32>
    %21 = vector.extract_strided_slice %12 {offsets = [2, 2, 0], sizes = [10, 16, 4], strides = [1, 1, 1]} : vector<12x18x4xf32> to vector<10x16x4xf32>
    %22 = tpu.concatenate %13, %14, %15, %16, %17, %18, %19, %20, %21 in 2 : vector<10x16x4xf32>, vector<10x16x4xf32>, vector<10x16x4xf32>, vector<10x16x4xf32>, vector<10x16x4xf32>, vector<10x16x4xf32>, vector<10x16x4xf32>, vector<10x16x4xf32>, vector<10x16x4xf32> -> vector<10x16x36xf32>
    %23 = vector.shape_cast %22 : vector<10x16x36xf32> to vector<160x36xf32>
    %cst_15 = arith.constant dense<0.000000e+00> : vector<160x4xf32>
    %24 = tpu.matmul %23, %7, %cst_15 {dimension_numbers = #tpu.dot_dimension_numbers<[1], [0], [0], [1], [0, 0, 1, 1], [], []>} : vector<160x36xf32>, vector<36x4xf32>, vector<160x4xf32> -> vector<160x4xf32>
    %25 = vector.broadcast %9 : vector<1x4xf32> to vector<160x4xf32>
    %26 = arith.addf %24, %25 : vector<160x4xf32>
    %cst_16 = arith.constant 0.000000e+00 : f32
    %27 = vector.broadcast %cst_16 : f32 to vector<160x4xf32>
    %28 = arith.maximumf %26, %27 : vector<160x4xf32>
    %29 = vector.shape_cast %28 : vector<160x4xf32> to vector<10x16x4xf32>
    %30 = tpu.iota {dimensions = array<i32: 0>} : vector<10x1xi32>
    %c8_i32 = arith.constant 8 : i32
    %31 = arith.muli %arg1, %c8_i32 : i32
    %c1_i32 = arith.constant 1 : i32
    %32 = arith.subi %31, %c1_i32 : i32
    %33 = vector.broadcast %32 : i32 to vector<10x1xi32>
    %34 = arith.addi %33, %30 : vector<10x1xi32>
    %c0_i32 = arith.constant 0 : i32
    %35 = vector.broadcast %c0_i32 : i32 to vector<10x1xi32>
    %36 = arith.cmpi sge, %34, %35 : vector<10x1xi32>
    %c16_i32 = arith.constant 16 : i32
    %37 = vector.broadcast %c16_i32 : i32 to vector<10x1xi32>
    %38 = arith.cmpi slt, %34, %37 : vector<10x1xi32>
    %39 = arith.andi %36, %38 : vector<10x1xi1>
    %40 = vector.shape_cast %39 : vector<10x1xi1> to vector<10x1x1xi1>
    %cst_17 = arith.constant 0.000000e+00 : f32
    %41 = vector.shape_cast %40 : vector<10x1x1xi1> to vector<10x1x1xi1>
    %42 = vector.broadcast %41 : vector<10x1x1xi1> to vector<10x16x4xi1>
    %43 = vector.broadcast %cst_17 : f32 to vector<10x16x4xf32>
    %44 = arith.select %42, %29, %43 : vector<10x16x4xi1>, vector<10x16x4xf32>
    %cst_18 = arith.constant 0.000000e+00 : f32
    %45 = vector.broadcast %cst_18 : f32 to vector<10x1x4xf32>
    %46 = tpu.concatenate %45, %44, %45 in 1 : vector<10x1x4xf32>, vector<10x16x4xf32>, vector<10x1x4xf32> -> vector<10x18x4xf32>
    %47 = vector.extract_strided_slice %46 {offsets = [0, 0, 0], sizes = [8, 16, 4], strides = [1, 1, 1]} : vector<10x18x4xf32> to vector<8x16x4xf32>
    %48 = vector.extract_strided_slice %46 {offsets = [0, 1, 0], sizes = [8, 16, 4], strides = [1, 1, 1]} : vector<10x18x4xf32> to vector<8x16x4xf32>
    %49 = vector.extract_strided_slice %46 {offsets = [0, 2, 0], sizes = [8, 16, 4], strides = [1, 1, 1]} : vector<10x18x4xf32> to vector<8x16x4xf32>
    %50 = vector.extract_strided_slice %46 {offsets = [1, 0, 0], sizes = [8, 16, 4], strides = [1, 1, 1]} : vector<10x18x4xf32> to vector<8x16x4xf32>
    %51 = vector.extract_strided_slice %46 {offsets = [1, 1, 0], sizes = [8, 16, 4], strides = [1, 1, 1]} : vector<10x18x4xf32> to vector<8x16x4xf32>
    %52 = vector.extract_strided_slice %46 {offsets = [1, 2, 0], sizes = [8, 16, 4], strides = [1, 1, 1]} : vector<10x18x4xf32> to vector<8x16x4xf32>
    %53 = vector.extract_strided_slice %46 {offsets = [2, 0, 0], sizes = [8, 16, 4], strides = [1, 1, 1]} : vector<10x18x4xf32> to vector<8x16x4xf32>
    %54 = vector.extract_strided_slice %46 {offsets = [2, 1, 0], sizes = [8, 16, 4], strides = [1, 1, 1]} : vector<10x18x4xf32> to vector<8x16x4xf32>
    %55 = vector.extract_strided_slice %46 {offsets = [2, 2, 0], sizes = [8, 16, 4], strides = [1, 1, 1]} : vector<10x18x4xf32> to vector<8x16x4xf32>
    %56 = tpu.concatenate %47, %48, %49, %50, %51, %52, %53, %54, %55 in 2 : vector<8x16x4xf32>, vector<8x16x4xf32>, vector<8x16x4xf32>, vector<8x16x4xf32>, vector<8x16x4xf32>, vector<8x16x4xf32>, vector<8x16x4xf32>, vector<8x16x4xf32>, vector<8x16x4xf32> -> vector<8x16x36xf32>
    %57 = vector.shape_cast %56 : vector<8x16x36xf32> to vector<128x36xf32>
    %cst_19 = arith.constant dense<0.000000e+00> : vector<128x4xf32>
    %58 = tpu.matmul %57, %8, %cst_19 {dimension_numbers = #tpu.dot_dimension_numbers<[1], [0], [0], [1], [0, 0, 1, 1], [], []>} : vector<128x36xf32>, vector<36x4xf32>, vector<128x4xf32> -> vector<128x4xf32>
    %59 = vector.broadcast %10 : vector<1x4xf32> to vector<128x4xf32>
    %60 = arith.addf %58, %59 : vector<128x4xf32>
    %61 = vector.shape_cast %60 : vector<128x4xf32> to vector<8x16x4xf32>
    %62 = arith.addf %1, %61 : vector<8x16x4xf32>
    %cst_20 = arith.constant 0.000000e+00 : f32
    %63 = vector.broadcast %cst_20 : f32 to vector<8x16x4xf32>
    %64 = arith.maximumf %62, %63 : vector<8x16x4xf32>
    %c0_21 = arith.constant 0 : index
    %c0_22 = arith.constant 0 : index
    %c0_23 = arith.constant 0 : index
    %c0_24 = arith.constant 0 : index
    %65 = vector.load %arg8[%c0_21, %c0_22, %c0_23, %c0_24] : memref<1x8x16x4xf32, #tpu.memory_space<vmem>>, vector<1x8x16x4xf32>
    %66 = vector.shape_cast %65 : vector<1x8x16x4xf32> to vector<8x16x4xf32>
    %67 = vector.shape_cast %64 : vector<8x16x4xf32> to vector<1x8x16x4xf32>
    tpu.vector_store %arg8[%c0_21, %c0_22, %c0_23, %c0_24], %67 {strides = array<i32>} : memref<1x8x16x4xf32, #tpu.memory_space<vmem>>, vector<1x8x16x4xf32>,
    return
  }
  func.func @transform_0(%arg0: i32, %arg1: i32) -> (i32, i32, i32, i32) {
    %c0_i32 = arith.constant 0 : i32
    %c0_i32_0 = arith.constant 0 : i32
    %c0_i32_1 = arith.constant 0 : i32
    return %arg0, %arg1, %c0_i32, %c0_i32_0 : i32, i32, i32, i32
  }
  func.func @transform_1(%arg0: i32, %arg1: i32) -> (i32, i32, i32, i32) {
    %c0_i32 = arith.constant 0 : i32
    %c0_i32_0 = arith.constant 0 : i32
    %c0_i32_1 = arith.constant 0 : i32
    return %arg0, %arg1, %c0_i32, %c0_i32_0 : i32, i32, i32, i32
  }
  func.func @transform_2(%arg0: i32, %arg1: i32) -> (i32, i32) {
    %c0_i32 = arith.constant 0 : i32
    %c0_i32_0 = arith.constant 0 : i32
    %c0_i32_1 = arith.constant 0 : i32
    return %c0_i32, %c0_i32_0 : i32, i32
  }
  func.func @transform_3(%arg0: i32, %arg1: i32) -> (i32, i32) {
    %c0_i32 = arith.constant 0 : i32
    %c0_i32_0 = arith.constant 0 : i32
    %c0_i32_1 = arith.constant 0 : i32
    return %c0_i32, %c0_i32_0 : i32, i32
  }
  func.func @transform_4(%arg0: i32, %arg1: i32) -> (i32, i32) {
    %c0_i32 = arith.constant 0 : i32
    %c0_i32_0 = arith.constant 0 : i32
    %c0_i32_1 = arith.constant 0 : i32
    return %c0_i32, %c0_i32_0 : i32, i32
  }
  func.func @transform_5(%arg0: i32, %arg1: i32) -> (i32, i32) {
    %c0_i32 = arith.constant 0 : i32
    %c0_i32_0 = arith.constant 0 : i32
    %c0_i32_1 = arith.constant 0 : i32
    return %c0_i32, %c0_i32_0 : i32, i32
  }
  func.func @transform_6(%arg0: i32, %arg1: i32) -> (i32, i32, i32, i32) {
    %c0_i32 = arith.constant 0 : i32
    %c0_i32_0 = arith.constant 0 : i32
    %c0_i32_1 = arith.constant 0 : i32
    return %arg0, %arg1, %c0_i32, %c0_i32_0 : i32, i32, i32, i32
  }
}

</mosaic_0001>

<llo_original>
// kernel: tpu_custom_call.1
$region0: #{tpu_custom_call.1}
  #allocation0 [shape = 'u32[]', space=smem, size = 0x4, offset = 0x4, fixed_abs, tag = 'smem constant byte address 0x4 - core index']
  #allocation1 [shape = 'u32[144,128]{1,0:T(1,128)}', space=vmem, size = 0x12000, scoped, tag = 'internal scratch']
  %s0 = inlined_call_operand.vmem [shape: f32[2,16,16,4], index: 0, kind: input, shape index: {}]
  %s1 = inlined_call_operand.vmem [shape: f32[2,8,16,4], index: 1, kind: input, shape index: {}]
  %s2 = inlined_call_operand.vmem [shape: f32[36,4], index: 2, kind: input, shape index: {}]
  %s3 = inlined_call_operand.vmem [shape: f32[1,4], index: 3, kind: input, shape index: {}]
  %s4 = inlined_call_operand.vmem [shape: f32[36,4], index: 4, kind: input, shape index: {}]
  %s5 = inlined_call_operand.vmem [shape: f32[1,4], index: 5, kind: input, shape index: {}]
  %s6 = inlined_call_operand.vmem [shape: f32[2,16,16,4], index: 6, kind: output, shape index: {}]
  %s7 = sld [smem:[#allocation0]]
  $region57: #{tpu_custom_call.1} parent=0
    _
  %s9 = ssub.s32 1, %s7
  %s10 = scalar_select 0, %s9, %s7
  loop: start=0, step=1, limit=6
  $region2: #{tpu_custom_call.1} parent=0 // loop_pre_header
    _
  $region3: #{tpu_custom_call.1} parent=0 // loop_header
    %s12 = sphi 0, %s16
    %p13 = scmp.ge.s32.totalorder %s12, 6
    %s19 = sphi 0, %s31
    %s20 = sphi 0, %s27
    %s21 = sphi 0, %s19
    %s22 = sphi 0, %s20
    %s23 = sphi 0, %s21
    %s24 = sphi 0, %s22
    %s36 = sphi 0, %s38
    %s39 = sphi 0, %s36
    %s40 = sphi 0, %s39
    %s56 = sphi 0, %s40
    %s64 = sphi 0, %s66
    %s67 = sphi 0, %s64
    %s68 = sphi 0, %s67
    %s84 = sphi 0, %s68
    %s88 = sphi 0, %s88
    %s90 = sphi 0, %s88
    %s91 = sphi 0, %s90
    %s105 = sphi 0, %s91
    %s109 = sphi 0, %s109
    %s111 = sphi 0, %s109
    %s112 = sphi 0, %s111
    %s126 = sphi 0, %s112
    %s130 = sphi 0, %s130
    %s132 = sphi 0, %s130
    %s133 = sphi 0, %s132
    %s147 = sphi 0, %s133
    %s151 = sphi 0, %s151
    %s153 = sphi 0, %s151
    %s154 = sphi 0, %s153
    %s168 = sphi 0, %s154
    %s176 = sphi 0, %s178
    %s179 = sphi 0, %s176
    %s180 = sphi 0, %s179
    %s196 = sphi 0, %s180
  $region4: #{tpu_custom_call.1} parent=0 // loop_header_branch
    %15 = sbr.rel (%p13) target = $region8
  $region5: #{tpu_custom_call.1} parent=0 // loop_body
    %s17 = ssub.s32 %s12, 1
    %s18 = ssub.s32 %s12, 2
    %s25 = sadd.s32 1, %s20
    %p26 = scmp.ge.s32.totalorder %s25, 2
    %s27 = scalar_select %p26, 0, %s25
    %s28 = sadd.s32 1, %s19
    %s29 = scalar_select %p26, %s28, %s19
    %p30 = scmp.ge.s32.totalorder %s29, 2
    %s31 = scalar_select %p30, 0, %s29
    %s32 = ssub.s32 %s19, %s31
    %s33 = ssub.s32 %s20, %s27
    %s34 = sor.u32 %s32, %s33
    %p35 = scmp.eq.s32.totalorder %s34, 0
    %s37 = sadd.s32 %s36, 1
    %s38 = scalar_select %p35, %s36, %s37
    %p41 = pneg %p35
    %p42 = scmp.eq.s32.totalorder %s12, 3
    %p43 = por %p41, %p42
    %p44 = scmp.ne.s32.totalorder %s36, %s39
    %p45 = scmp.eq.s32.totalorder %s12, 0
    %p46 = por %p44, %p45
    %p47 = scmp.ne.s32.totalorder %s36, %s39
    %p48 = scmp.eq.s32.totalorder %s17, 3
    %p49 = por %p47, %p48
    %p50 = scmp.ne.s32.totalorder %s39, %s40
    %p51 = scmp.eq.s32.totalorder %s17, 0
    %p52 = por %p50, %p51
    %p53 = scmp.ne.s32.totalorder %s39, %s40
    %p54 = scmp.eq.s32.totalorder %s18, 3
    %p55 = por %p53, %p54
    %p57 = scmp.ne.s32.totalorder %s40, %s56
    %p58 = scmp.eq.s32.totalorder %s18, 0
    %p59 = por %p57, %p58
    %s60 = ssub.s32 %s19, %s31
    %s61 = ssub.s32 %s20, %s27
    %s62 = sor.u32 %s60, %s61
    %p63 = scmp.eq.s32.totalorder %s62, 0
    %s65 = sadd.s32 %s64, 1
    %s66 = scalar_select %p63, %s64, %s65
    %p69 = pneg %p63
    %p70 = scmp.eq.s32.totalorder %s12, 3
    %p71 = por %p69, %p70
    %p72 = scmp.ne.s32.totalorder %s64, %s67
    %p73 = scmp.eq.s32.totalorder %s12, 0
    %p74 = por %p72, %p73
    %p75 = scmp.ne.s32.totalorder %s64, %s67
    %p76 = scmp.eq.s32.totalorder %s17, 3
    %p77 = por %p75, %p76
    %p78 = scmp.ne.s32.totalorder %s67, %s68
    %p79 = scmp.eq.s32.totalorder %s17, 0
    %p80 = por %p78, %p79
    %p81 = scmp.ne.s32.totalorder %s67, %s68
    %p82 = scmp.eq.s32.totalorder %s18, 3
    %p83 = por %p81, %p82
    %p85 = scmp.ne.s32.totalorder %s68, %s84
    %p86 = scmp.eq.s32.totalorder %s18, 0
    %p87 = por %p85, %p86
    %s89 = sadd.s32 %s88, 1
    %p92 = scmp.eq.s32.totalorder %s12, 3
    %p93 = scmp.ne.s32.totalorder %s88, %s90
    %p94 = scmp.eq.s32.totalorder %s12, 0
    %p95 = por %p93, %p94
    %p96 = scmp.ne.s32.totalorder %s88, %s90
    %p97 = scmp.eq.s32.totalorder %s17, 3
    %p98 = por %p96, %p97
    %p99 = scmp.ne.s32.totalorder %s90, %s91
    %p100 = scmp.eq.s32.totalorder %s17, 0
    %p101 = por %p99, %p100
    %p102 = scmp.ne.s32.totalorder %s90, %s91
    %p103 = scmp.eq.s32.totalorder %s18, 3
    %p104 = por %p102, %p103
    %p106 = scmp.ne.s32.totalorder %s91, %s105
    %p107 = scmp.eq.s32.totalorder %s18, 0
    %p108 = por %p106, %p107
    %s110 = sadd.s32 %s109, 1
    %p113 = scmp.eq.s32.totalorder %s12, 3
    %p114 = scmp.ne.s32.totalorder %s109, %s111
    %p115 = scmp.eq.s32.totalorder %s12, 0
    %p116 = por %p114, %p115
    %p117 = scmp.ne.s32.totalorder %s109, %s111
    %p118 = scmp.eq.s32.totalorder %s17, 3
    %p119 = por %p117, %p118
    %p120 = scmp.ne.s32.totalorder %s111, %s112
    %p121 = scmp.eq.s32.totalorder %s17, 0
    %p122 = por %p120, %p121
    %p123 = scmp.ne.s32.totalorder %s111, %s112
    %p124 = scmp.eq.s32.totalorder %s18, 3
    %p125 = por %p123, %p124
    %p127 = scmp.ne.s32.totalorder %s112, %s126
    %p128 = scmp.eq.s32.totalorder %s18, 0
    %p129 = por %p127, %p128
    %s131 = sadd.s32 %s130, 1
    %p134 = scmp.eq.s32.totalorder %s12, 3
    %p135 = scmp.ne.s32.totalorder %s130, %s132
    %p136 = scmp.eq.s32.totalorder %s12, 0
    %p137 = por %p135, %p136
    %p138 = scmp.ne.s32.totalorder %s130, %s132
    %p139 = scmp.eq.s32.totalorder %s17, 3
    %p140 = por %p138, %p139
    %p141 = scmp.ne.s32.totalorder %s132, %s133
    %p142 = scmp.eq.s32.totalorder %s17, 0
    %p143 = por %p141, %p142
    %p144 = scmp.ne.s32.totalorder %s132, %s133
    %p145 = scmp.eq.s32.totalorder %s18, 3
    %p146 = por %p144, %p145
    %p148 = scmp.ne.s32.totalorder %s133, %s147
    %p149 = scmp.eq.s32.totalorder %s18, 0
    %p150 = por %p148, %p149
    %s152 = sadd.s32 %s151, 1
    %p155 = scmp.eq.s32.totalorder %s12, 3
    %p156 = scmp.ne.s32.totalorder %s151, %s153
    %p157 = scmp.eq.s32.totalorder %s12, 0
    %p158 = por %p156, %p157
    %p159 = scmp.ne.s32.totalorder %s151, %s153
    %p160 = scmp.eq.s32.totalorder %s17, 3
    %p161 = por %p159, %p160
    %p162 = scmp.ne.s32.totalorder %s153, %s154
    %p163 = scmp.eq.s32.totalorder %s17, 0
    %p164 = por %p162, %p163
    %p165 = scmp.ne.s32.totalorder %s153, %s154
    %p166 = scmp.eq.s32.totalorder %s18, 3
    %p167 = por %p165, %p166
    %p169 = scmp.ne.s32.totalorder %s154, %s168
    %p170 = scmp.eq.s32.totalorder %s18, 0
    %p171 = por %p169, %p170
    %s172 = ssub.s32 %s19, %s31
    %s173 = ssub.s32 %s20, %s27
    %s174 = sor.u32 %s172, %s173
    %p175 = scmp.eq.s32.totalorder %s174, 0
    %s177 = sadd.s32 %s176, 1
    %s178 = scalar_select %p175, %s176, %s177
    %p181 = pneg %p175
    %p182 = scmp.eq.s32.totalorder %s12, 3
    %p183 = por %p181, %p182
    %p184 = scmp.ne.s32.totalorder %s176, %s179
    %p185 = scmp.eq.s32.totalorder %s12, 0
    %p186 = por %p184, %p185
    %p187 = scmp.ne.s32.totalorder %s176, %s179
    %p188 = scmp.eq.s32.totalorder %s17, 3
    %p189 = por %p187, %p188
    %p190 = scmp.ne.s32.totalorder %s179, %s180
    %p191 = scmp.eq.s32.totalorder %s17, 0
    %p192 = por %p190, %p191
    %p193 = scmp.ne.s32.totalorder %s179, %s180
    %p194 = scmp.eq.s32.totalorder %s18, 3
    %p195 = por %p193, %p194
    %p197 = scmp.ne.s32.totalorder %s180, %s196
    %p198 = scmp.eq.s32.totalorder %s18, 0
    %p199 = por %p197, %p198
    %p200 = scmp.le.s32.totalorder 1, %s12
    %p201 = scmp.lt.s32.totalorder %s12, 5
    %p202 = pnand %p200, %p201
    %p203 = pneg %p202
    // Predicated region
    $region9: #{tpu_custom_call.1} parent=5 // pred_check
      _
    $region10: #{tpu_custom_call.1} parent=5 // pred_check_branch
      %205 = sbr.rel (%p202) target = $region12
    $region11: #{tpu_custom_call.1} parent=5 // pred_region
      %s206 = ssub.s32 %s12, 1
      // Predicated region
      $region13: #{tpu_custom_call.1} parent=11 // pred_check
        %p207 = pneg %p101
      $region14: #{tpu_custom_call.1} parent=11 // pred_check_branch
        %209 = sbr.rel (%p207) target = $region16
      $region15: #{tpu_custom_call.1} parent=11 // pred_region
        _
      $region16: #{tpu_custom_call.1} parent=11 // pred_fallthru
        _
      // Predicated region
      $region17: #{tpu_custom_call.1} parent=11 // pred_check
        %p210 = pneg %p122
      $region18: #{tpu_custom_call.1} parent=11 // pred_check_branch
        %212 = sbr.rel (%p210) target = $region20
      $region19: #{tpu_custom_call.1} parent=11 // pred_region
        _
      $region20: #{tpu_custom_call.1} parent=11 // pred_fallthru
        _
      // Predicated region
      $region21: #{tpu_custom_call.1} parent=11 // pred_check
        %p213 = pneg %p143
      $region22: #{tpu_custom_call.1} parent=11 // pred_check_branch
        %215 = sbr.rel (%p213) target = $region24
      $region23: #{tpu_custom_call.1} parent=11 // pred_region
        _
      $region24: #{tpu_custom_call.1} parent=11 // pred_fallthru
        _
      // Predicated region
      $region25: #{tpu_custom_call.1} parent=11 // pred_check
        %p216 = pneg %p164
      $region26: #{tpu_custom_call.1} parent=11 // pred_check_branch
        %218 = sbr.rel (%p216) target = $region28
      $region27: #{tpu_custom_call.1} parent=11 // pred_region
        _
      $region28: #{tpu_custom_call.1} parent=11 // pred_fallthru
        _
    $region12: #{tpu_custom_call.1} parent=5 // pred_fallthru
      _
    %p219 = scmp.lt.s32.totalorder %s12, 4
    // Predicated region
    $region29: #{tpu_custom_call.1} parent=5 // pred_check
      %p220 = pneg %p219
    $region30: #{tpu_custom_call.1} parent=5 // pred_check_branch
      %222 = sbr.rel (%p220) target = $region32
    $region31: #{tpu_custom_call.1} parent=5 // pred_region
      // Predicated region
      $region33: #{tpu_custom_call.1} parent=31 // pred_check
        %p223 = pneg %p46
      $region34: #{tpu_custom_call.1} parent=31 // pred_check_branch
        %225 = sbr.rel (%p223) target = $region36
      $region35: #{tpu_custom_call.1} parent=31 // pred_region
        %s226 = smul.u32 8, %s20
        %p227 = scmp.lt.s32.totalorder %s19, 1
        %s228 = scalar_select %p227, %s19, 1
        %p229 = scmp.lt.s32.totalorder %s226, 15
        %s230 = scalar_select %p229, %s226, 15
        %s231 = smul.addr %s230, 2
        %s232 = smul.addr %s228, 32
        %s233 = sadd.s32 %s231, %s232
        %s234 = smul.addr %s233, 8
        %s235 = scalar_lea.vmem %s0, %s234
        %s236 = smul.u32 8, %s20
      $region36: #{tpu_custom_call.1} parent=31 // pred_fallthru
        _
      // Predicated region
      $region37: #{tpu_custom_call.1} parent=31 // pred_check
        %p237 = pneg %p74
      $region38: #{tpu_custom_call.1} parent=31 // pred_check_branch
        %239 = sbr.rel (%p237) target = $region40
      $region39: #{tpu_custom_call.1} parent=31 // pred_region
        %s240 = smul.u32 4, %s20
        %p241 = scmp.lt.s32.totalorder %s19, 1
        %s242 = scalar_select %p241, %s19, 1
        %p243 = scmp.lt.s32.totalorder %s240, 7
        %s244 = scalar_select %p243, %s240, 7
        %s245 = smul.addr %s244, 2
        %s246 = smul.addr %s242, 16
        %s247 = sadd.s32 %s245, %s246
        %s248 = smul.addr %s247, 8
        %s249 = scalar_lea.vmem %s1, %s248
        %s250 = smul.u32 4, %s20
      $region40: #{tpu_custom_call.1} parent=31 // pred_fallthru
        _
    $region32: #{tpu_custom_call.1} parent=5 // pred_fallthru
      _
    %p251 = scmp.le.s32.totalorder 1, %s12
    %p252 = scmp.lt.s32.totalorder %s12, 5
    %p253 = pnand %p251, %p252
    %p254 = pneg %p253
    // Predicated region
    $region41: #{tpu_custom_call.1} parent=5 // pred_check
      _
    $region42: #{tpu_custom_call.1} parent=5 // pred_check_branch
      %256 = sbr.rel (%p253) target = $region44
    $region43: #{tpu_custom_call.1} parent=5 // pred_region
      %s257 = ssub.s32 %s12, 1
      %s258 = smul.u32 8, %s22
      %p259 = scmp.lt.s32.totalorder %s21, 1
      %s260 = scalar_select %p259, %s21, 1
      %p261 = scmp.lt.s32.totalorder %s258, 15
      %s262 = scalar_select %p261, %s258, 15
      %s263 = smul.addr %s262, 2
      %s264 = smul.addr %s260, 32
      %s265 = sadd.s32 %s263, %s264
      %s266 = smul.addr %s265, 8
      %s267 = scalar_lea.vmem %s0, %s266
      %p268 = pneg %p52
      %p269 = pneg %p49
      %s270 = smul.u32 4, %s22
      %p271 = scmp.lt.s32.totalorder %s21, 1
      %s272 = scalar_select %p271, %s21, 1
      %p273 = scmp.lt.s32.totalorder %s270, 7
      %s274 = scalar_select %p273, %s270, 7
      %s275 = smul.addr %s274, 2
      %s276 = smul.addr %s272, 16
      %s277 = sadd.s32 %s275, %s276
      %s278 = smul.addr %s277, 8
      %s279 = scalar_lea.vmem %s1, %s278
      %p280 = pneg %p80
      %p281 = pneg %p77
      %p282 = pneg %p101
      %p283 = pneg %p98
      %p284 = pneg %p122
      %p285 = pneg %p119
      %p286 = pneg %p143
      %p287 = pneg %p140
      %p288 = pneg %p164
      %p289 = pneg %p161
      %p290 = pneg %p192
      %p291 = pneg %p189
      %s292 = smul.u32 8, %s22
      %p293 = scmp.lt.s32.totalorder %s21, 1
      %s294 = scalar_select %p293, %s21, 1
      %p295 = scmp.lt.s32.totalorder %s292, 15
      %s296 = scalar_select %p295, %s292, 15
      %s297 = smul.addr %s296, 2
      %s298 = smul.addr %s294, 32
      %s299 = sadd.s32 %s297, %s298
      %s300 = smul.addr %s299, 8
      %s301 = scalar_lea.vmem %s6, %s300
      %s302 = smul.u32 8, %s22
      %p303 = scmp.lt.s32.totalorder %s21, 1
      %s304 = scalar_select %p303, %s21, 1
      %p305 = scmp.lt.s32.totalorder %s302, 15
      %s306 = scalar_select %p305, %s302, 15
      %s307 = smul.addr %s306, 2
      %s308 = smul.addr %s304, 32
      %s309 = sadd.s32 %s307, %s308
      %s310 = smul.addr %s309, 8
      %s311 = scalar_lea.vmem %s0, %s310
      %s312 = smul.u32 8, %s22
      %s313 = smul.u32 4, %s22
      %p314 = scmp.lt.s32.totalorder %s21, 1
      %s315 = scalar_select %p314, %s21, 1
      %p316 = scmp.lt.s32.totalorder %s313, 7
      %s317 = scalar_select %p316, %s313, 7
      %s318 = smul.addr %s317, 2
      %s319 = smul.addr %s315, 16
      %s320 = sadd.s32 %s318, %s319
      %s321 = smul.addr %s320, 8
      %s322 = scalar_lea.vmem %s1, %s321
      %s323 = smul.u32 4, %s22
      %s324 = smul.u32 8, %s22
      %p325 = scmp.lt.s32.totalorder %s21, 1
      %s326 = scalar_select %p325, %s21, 1
      %p327 = scmp.lt.s32.totalorder %s324, 15
      %s328 = scalar_select %p327, %s324, 15
      %s329 = smul.addr %s328, 2
      %s330 = smul.addr %s326, 32
      %s331 = sadd.s32 %s329, %s330
      %s332 = smul.addr %s331, 8
      %s333 = scalar_lea.vmem %s6, %s332
      %s334 = smul.u32 8, %s22
      %v335 = vld [vmem:[%s311] sm:$0xff]
      %v336 = vld [vmem:[%s311 + $0x8] sm:$0xff]
      %v337 = vld [vmem:[%s311 + $0x10] sm:$0xff]
      %v338 = vld [vmem:[%s311 + $0x18] sm:$0xff]
      %v339 = vld [vmem:[%s311 + $0x20] sm:$0xff]
      %v340 = vld [vmem:[%s311 + $0x28] sm:$0xff]
      %v341 = vld [vmem:[%s311 + $0x30] sm:$0xff]
      %v342 = vld [vmem:[%s311 + $0x38] sm:$0xff]
      %v343 = vld [vmem:[%s311 + $0x40] sm:$0xff]
      %v344 = vld [vmem:[%s311 + $0x48] sm:$0xff]
      %v345 = vld [vmem:[%s311 + $0x50] sm:$0xff]
      %v346 = vld [vmem:[%s311 + $0x58] sm:$0xff]
      %v347 = vld [vmem:[%s311 + $0x60] sm:$0xff]
      %v348 = vld [vmem:[%s311 + $0x68] sm:$0xff]
      %v349 = vld [vmem:[%s311 + $0x70] sm:$0xff]
      %v350 = vld [vmem:[%s311 + $0x78] sm:$0xff]
      %v351 = vld [vmem:[%s322] sm:$0xff]
      %v352 = vld [vmem:[%s322 + $0x8] sm:$0xff]
      %v353 = vld [vmem:[%s322 + $0x10] sm:$0xff]
      %v354 = vld [vmem:[%s322 + $0x18] sm:$0xff]
      %v355 = vld [vmem:[%s322 + $0x20] sm:$0xff]
      %v356 = vld [vmem:[%s322 + $0x28] sm:$0xff]
      %v357 = vld [vmem:[%s322 + $0x30] sm:$0xff]
      %v358 = vld [vmem:[%s322 + $0x38] sm:$0xff]
      %v359 = vld [vmem:[%s2] sm:$0xff]
      %v360 = vld [vmem:[%s2 + $0x8] sm:$0xff]
      %v361 = vld [vmem:[%s2 + $0x10] sm:$0xff]
      %v362 = vld [vmem:[%s2 + $0x18] sm:$0xff]
      %v363 = vld [vmem:[%s2 + $0x20] sm:$0xf]
      %v364 = vld [vmem:[%s4] sm:$0xff]
      %v365 = vld [vmem:[%s4 + $0x8] sm:$0xff]
      %v366 = vld [vmem:[%s4 + $0x10] sm:$0xff]
      %v367 = vld [vmem:[%s4 + $0x18] sm:$0xff]
      %v368 = vld [vmem:[%s4 + $0x20] sm:$0xf]
      %v369 = vld [vmem:[%s3] sm:$0x1]
      %v370 = vld [vmem:[%s5] sm:$0x1]
      %vm395 = vcmask 1040384
      %v396 = vrot.slane %v351, 7
      %v397 = vrot.slane %v352, 7
      %v398 = vsel %vm395, %v396, %v397
      %v399 = vrot.slane %v353, 7
      %v400 = vrot.slane %v354, 7
      %v401 = vsel %vm395, %v399, %v400
      %v402 = vrot.slane %v335, 7
      %v403 = vrot.slane %v336, 7
      %v404 = vsel %vm395, %v402, %v403
      %v405 = vrot.slane %v337, 7
      %v406 = vrot.slane %v338, 7
      %v407 = vsel %vm395, %v405, %v406
      %v408 = vrot.slane %v339, 7
      %v409 = vrot.slane %v340, 7
      %v410 = vsel %vm395, %v408, %v409
      %v411 = vrot.slane %v341, 7
      %v412 = vrot.slane %v342, 7
      %v413 = vsel %vm395, %v411, %v412
      %v414 = vrot.slane %v343, 7
      %v415 = vrot.slane %v344, 7
      %v416 = vsel %vm395, %v414, %v415
      %v417 = vrot.slane %v345, 7
      %v418 = vrot.slane %v346, 7
      %v419 = vsel %vm395, %v417, %v418
      %v420 = vrot.slane %v347, 7
      %v421 = vrot.slane %v348, 7
      %v422 = vsel %vm395, %v420, %v421
      %v423 = vrot.slane %v349, 7
      %v424 = vrot.slane %v350, 7
      %v425 = vsel %vm395, %v423, %v424
      %v426 = vrot.slane %v355, 7
      %v427 = vrot.slane %v356, 7
      %v428 = vsel %vm395, %v426, %v427
      %v429 = vrot.slane %v357, 7
      %v430 = vrot.slane %v358, 7
      %v431 = vsel %vm395, %v429, %v430
      %v466 = vsel %vm395, 0.0, %v396
      %v467 = vsel %vm395, 0.0, %v399
      %v468 = vsel %vm395, 0.0, %v402
      %v469 = vsel %vm395, 0.0, %v405
      %v470 = vsel %vm395, 0.0, %v408
      %v471 = vsel %vm395, 0.0, %v411
      %v472 = vsel %vm395, 0.0, %v414
      %v473 = vsel %vm395, 0.0, %v417
      %v474 = vsel %vm395, 0.0, %v420
      %v475 = vsel %vm395, 0.0, %v423
      %v476 = vsel %vm395, 0.0, %v426
      %v477 = vsel %vm395, 0.0, %v429
      %v478 = vsel %vm395, %v397, 0.0
      %v479 = vsel %vm395, %v400, 0.0
      %v480 = vsel %vm395, %v403, 0.0
      %v481 = vsel %vm395, %v406, 0.0
      %v482 = vsel %vm395, %v409, 0.0
      %v483 = vsel %vm395, %v412, 0.0
      %v484 = vsel %vm395, %v415, 0.0
      %v485 = vsel %vm395, %v418, 0.0
      %v486 = vsel %vm395, %v421, 0.0
      %v487 = vsel %vm395, %v424, 0.0
      %v488 = vsel %vm395, %v427, 0.0
      %v489 = vsel %vm395, %v430, 0.0
      %vm510 = vcmask 1046528
      %v511 = vrot.slane %v466, 1
      %v512 = vrot.slane %v398, 1
      %v513 = vsel %vm510, %v511, %v512
      %v514 = vrot.slane %v478, 1
      %v515 = vsel %vm510, %v512, %v514
      %v516 = vrot.slane %v467, 1
      %v517 = vrot.slane %v401, 1
      %v518 = vsel %vm510, %v516, %v517
      %v519 = vrot.slane %v479, 1
      %v520 = vsel %vm510, %v517, %v519
      %v521 = vrot.slane %v468, 1
      %v522 = vrot.slane %v404, 1
      %v523 = vsel %vm510, %v521, %v522
      %v524 = vrot.slane %v480, 1
      %v525 = vsel %vm510, %v522, %v524
      %v526 = vrot.slane %v469, 1
      %v527 = vrot.slane %v407, 1
      %v528 = vsel %vm510, %v526, %v527
      %v529 = vrot.slane %v481, 1
      %v530 = vsel %vm510, %v527, %v529
      %v531 = vrot.slane %v470, 1
      %v532 = vrot.slane %v410, 1
      %v533 = vsel %vm510, %v531, %v532
      %v534 = vrot.slane %v482, 1
      %v535 = vsel %vm510, %v532, %v534
      %v536 = vrot.slane %v471, 1
      %v537 = vrot.slane %v413, 1
      %v538 = vsel %vm510, %v536, %v537
      %v539 = vrot.slane %v483, 1
      %v540 = vsel %vm510, %v537, %v539
      %v541 = vrot.slane %v472, 1
      %v542 = vrot.slane %v416, 1
      %v543 = vsel %vm510, %v541, %v542
      %v544 = vrot.slane %v484, 1
      %v545 = vsel %vm510, %v542, %v544
      %v546 = vrot.slane %v473, 1
      %v547 = vrot.slane %v419, 1
      %v548 = vsel %vm510, %v546, %v547
      %v549 = vrot.slane %v485, 1
      %v550 = vsel %vm510, %v547, %v549
      %v551 = vrot.slane %v474, 1
      %v552 = vrot.slane %v422, 1
      %v553 = vsel %vm510, %v551, %v552
      %v554 = vrot.slane %v486, 1
      %v555 = vsel %vm510, %v552, %v554
      %v556 = vrot.slane %v475, 1
      %v557 = vrot.slane %v425, 1
      %v558 = vsel %vm510, %v556, %v557
      %v559 = vrot.slane %v487, 1
      %v560 = vsel %vm510, %v557, %v559
      %561 = vrot.lane.b32.xlu0 %v513, 4
      %v562 = vpop.permute.xlu0 %561
      %563 = vrot.lane.b32.xlu0 %v515, 4
      %v564 = vpop.permute.xlu0 %563
      %565 = vrot.lane.b32.xlu0 %v518, 4
      %v566 = vpop.permute.xlu0 %565
      %567 = vrot.lane.b32.xlu0 %v520, 4
      %v568 = vpop.permute.xlu0 %567
      %569 = vrot.lane.b32.xlu0 %v523, 4
      %v570 = vpop.permute.xlu0 %569
      %571 = vrot.lane.b32.xlu0 %v525, 4
      %v572 = vpop.permute.xlu0 %571
      %573 = vrot.lane.b32.xlu0 %v528, 4
      %v574 = vpop.permute.xlu0 %573
      %575 = vrot.lane.b32.xlu0 %v530, 4
      %v576 = vpop.permute.xlu0 %575
      %577 = vrot.lane.b32.xlu0 %v533, 4
      %v578 = vpop.permute.xlu0 %577
      %579 = vrot.lane.b32.xlu0 %v535, 4
      %v580 = vpop.permute.xlu0 %579
      %581 = vrot.lane.b32.xlu0 %v538, 4
      %v582 = vpop.permute.xlu0 %581
      %583 = vrot.lane.b32.xlu0 %v540, 4
      %v584 = vpop.permute.xlu0 %583
      %585 = vrot.lane.b32.xlu0 %v543, 4
      %v586 = vpop.permute.xlu0 %585
      %587 = vrot.lane.b32.xlu0 %v545, 4
      %v588 = vpop.permute.xlu0 %587
      %589 = vrot.lane.b32.xlu0 %v548, 4
      %v590 = vpop.permute.xlu0 %589
      %591 = vrot.lane.b32.xlu0 %v550, 4
      %v592 = vpop.permute.xlu0 %591
      %593 = vrot.lane.b32.xlu0 %v553, 4
      %v594 = vpop.permute.xlu0 %593
      %595 = vrot.lane.b32.xlu0 %v555, 4
      %v596 = vpop.permute.xlu0 %595
      %597 = vrot.lane.b32.xlu0 %v558, 4
      %v598 = vpop.permute.xlu0 %597
      %599 = vrot.lane.b32.xlu0 %v560, 4
      %v600 = vpop.permute.xlu0 %599
      %vm621 = vcmask 1045504
      %v622 = vrot.slane %v466, 2
      %v623 = vrot.slane %v398, 2
      %v624 = vsel %vm621, %v622, %v623
      %v625 = vrot.slane %v478, 2
      %v626 = vsel %vm621, %v623, %v625
      %v627 = vrot.slane %v467, 2
      %v628 = vrot.slane %v401, 2
      %v629 = vsel %vm621, %v627, %v628
      %v630 = vrot.slane %v479, 2
      %v631 = vsel %vm621, %v628, %v630
      %v632 = vrot.slane %v468, 2
      %v633 = vrot.slane %v404, 2
      %v634 = vsel %vm621, %v632, %v633
      %v635 = vrot.slane %v480, 2
      %v636 = vsel %vm621, %v633, %v635
      %v637 = vrot.slane %v469, 2
      %v638 = vrot.slane %v407, 2
      %v639 = vsel %vm621, %v637, %v638
      %v640 = vrot.slane %v481, 2
      %v641 = vsel %vm621, %v638, %v640
      %v642 = vrot.slane %v470, 2
      %v643 = vrot.slane %v410, 2
      %v644 = vsel %vm621, %v642, %v643
      %v645 = vrot.slane %v482, 2
      %v646 = vsel %vm621, %v643, %v645
      %v647 = vrot.slane %v471, 2
      %v648 = vrot.slane %v413, 2
      %v649 = vsel %vm621, %v647, %v648
      %v650 = vrot.slane %v483, 2
      %v651 = vsel %vm621, %v648, %v650
      %v652 = vrot.slane %v472, 2
      %v653 = vrot.slane %v416, 2
      %v654 = vsel %vm621, %v652, %v653
      %v655 = vrot.slane %v484, 2
      %v656 = vsel %vm621, %v653, %v655
      %v657 = vrot.slane %v473, 2
      %v658 = vrot.slane %v419, 2
      %v659 = vsel %vm621, %v657, %v658
      %v660 = vrot.slane %v485, 2
      %v661 = vsel %vm621, %v658, %v660
      %v662 = vrot.slane %v474, 2
      %v663 = vrot.slane %v422, 2
      %v664 = vsel %vm621, %v662, %v663
      %v665 = vrot.slane %v486, 2
      %v666 = vsel %vm621, %v663, %v665
      %v667 = vrot.slane %v475, 2
      %v668 = vrot.slane %v425, 2
      %v669 = vsel %vm621, %v667, %v668
      %v670 = vrot.slane %v487, 2
      %v671 = vsel %vm621, %v668, %v670
      %672 = vrot.lane.b32.xlu0 %v624, 8
      %v673 = vpop.permute.xlu0 %672
      %674 = vrot.lane.b32.xlu0 %v626, 8
      %v675 = vpop.permute.xlu0 %674
      %676 = vrot.lane.b32.xlu0 %v629, 8
      %v677 = vpop.permute.xlu0 %676
      %678 = vrot.lane.b32.xlu0 %v631, 8
      %v679 = vpop.permute.xlu0 %678
      %680 = vrot.lane.b32.xlu0 %v634, 8
      %v681 = vpop.permute.xlu0 %680
      %682 = vrot.lane.b32.xlu0 %v636, 8
      %v683 = vpop.permute.xlu0 %682
      %684 = vrot.lane.b32.xlu0 %v639, 8
      %v685 = vpop.permute.xlu0 %684
      %686 = vrot.lane.b32.xlu0 %v641, 8
      %v687 = vpop.permute.xlu0 %686
      %688 = vrot.lane.b32.xlu0 %v644, 8
      %v689 = vpop.permute.xlu0 %688
      %690 = vrot.lane.b32.xlu0 %v646, 8
      %v691 = vpop.permute.xlu0 %690
      %692 = vrot.lane.b32.xlu0 %v649, 8
      %v693 = vpop.permute.xlu0 %692
      %694 = vrot.lane.b32.xlu0 %v651, 8
      %v695 = vpop.permute.xlu0 %694
      %696 = vrot.lane.b32.xlu0 %v654, 8
      %v697 = vpop.permute.xlu0 %696
      %698 = vrot.lane.b32.xlu0 %v656, 8
      %v699 = vpop.permute.xlu0 %698
      %700 = vrot.lane.b32.xlu0 %v659, 8
      %v701 = vpop.permute.xlu0 %700
      %702 = vrot.lane.b32.xlu0 %v661, 8
      %v703 = vpop.permute.xlu0 %702
      %704 = vrot.lane.b32.xlu0 %v664, 8
      %v705 = vpop.permute.xlu0 %704
      %706 = vrot.lane.b32.xlu0 %v666, 8
      %v707 = vpop.permute.xlu0 %706
      %708 = vrot.lane.b32.xlu0 %v669, 8
      %v709 = vpop.permute.xlu0 %708
      %710 = vrot.lane.b32.xlu0 %v671, 8
      %v711 = vpop.permute.xlu0 %710
      %733 = vrot.lane.b32.xlu0 %v467, 12
      %v734 = vpop.permute.xlu0 %733
      %735 = vrot.lane.b32.xlu0 %v401, 12
      %v736 = vpop.permute.xlu0 %735
      %737 = vrot.lane.b32.xlu0 %v468, 12
      %v738 = vpop.permute.xlu0 %737
      %739 = vrot.lane.b32.xlu0 %v404, 12
      %v740 = vpop.permute.xlu0 %739
      %741 = vrot.lane.b32.xlu0 %v469, 12
      %v742 = vpop.permute.xlu0 %741
      %743 = vrot.lane.b32.xlu0 %v407, 12
      %v744 = vpop.permute.xlu0 %743
      %745 = vrot.lane.b32.xlu0 %v470, 12
      %v746 = vpop.permute.xlu0 %745
      %747 = vrot.lane.b32.xlu0 %v410, 12
      %v748 = vpop.permute.xlu0 %747
      %749 = vrot.lane.b32.xlu0 %v471, 12
      %v750 = vpop.permute.xlu0 %749
      %751 = vrot.lane.b32.xlu0 %v413, 12
      %v752 = vpop.permute.xlu0 %751
      %753 = vrot.lane.b32.xlu0 %v472, 12
      %v754 = vpop.permute.xlu0 %753
      %755 = vrot.lane.b32.xlu0 %v416, 12
      %v756 = vpop.permute.xlu0 %755
      %757 = vrot.lane.b32.xlu0 %v473, 12
      %v758 = vpop.permute.xlu0 %757
      %759 = vrot.lane.b32.xlu0 %v419, 12
      %v760 = vpop.permute.xlu0 %759
      %761 = vrot.lane.b32.xlu0 %v474, 12
      %v762 = vpop.permute.xlu0 %761
      %763 = vrot.lane.b32.xlu0 %v422, 12
      %v764 = vpop.permute.xlu0 %763
      %765 = vrot.lane.b32.xlu0 %v475, 12
      %v766 = vpop.permute.xlu0 %765
      %767 = vrot.lane.b32.xlu0 %v425, 12
      %v768 = vpop.permute.xlu0 %767
      %769 = vrot.lane.b32.xlu0 %v476, 12
      %v770 = vpop.permute.xlu0 %769
      %771 = vrot.lane.b32.xlu0 %v428, 12
      %v772 = vpop.permute.xlu0 %771
      %v794 = vrot.slane %v476, 1
      %v795 = vrot.slane %v428, 1
      %v796 = vsel %vm510, %v794, %v795
      %v797 = vrot.slane %v488, 1
      %v798 = vsel %vm510, %v795, %v797
      %799 = vrot.lane.b32.xlu0 %v518, 16
      %v800 = vpop.permute.xlu0 %799
      %801 = vrot.lane.b32.xlu0 %v520, 16
      %v802 = vpop.permute.xlu0 %801
      %803 = vrot.lane.b32.xlu0 %v523, 16
      %v804 = vpop.permute.xlu0 %803
      %805 = vrot.lane.b32.xlu0 %v525, 16
      %v806 = vpop.permute.xlu0 %805
      %807 = vrot.lane.b32.xlu0 %v528, 16
      %v808 = vpop.permute.xlu0 %807
      %809 = vrot.lane.b32.xlu0 %v530, 16
      %v810 = vpop.permute.xlu0 %809
      %811 = vrot.lane.b32.xlu0 %v533, 16
      %v812 = vpop.permute.xlu0 %811
      %813 = vrot.lane.b32.xlu0 %v535, 16
      %v814 = vpop.permute.xlu0 %813
      %815 = vrot.lane.b32.xlu0 %v538, 16
      %v816 = vpop.permute.xlu0 %815
      %817 = vrot.lane.b32.xlu0 %v540, 16
      %v818 = vpop.permute.xlu0 %817
      %819 = vrot.lane.b32.xlu0 %v543, 16
      %v820 = vpop.permute.xlu0 %819
      %821 = vrot.lane.b32.xlu0 %v545, 16
      %v822 = vpop.permute.xlu0 %821
      %823 = vrot.lane.b32.xlu0 %v548, 16
      %v824 = vpop.permute.xlu0 %823
      %825 = vrot.lane.b32.xlu0 %v550, 16
      %v826 = vpop.permute.xlu0 %825
      %827 = vrot.lane.b32.xlu0 %v553, 16
      %v828 = vpop.permute.xlu0 %827
      %829 = vrot.lane.b32.xlu0 %v555, 16
      %v830 = vpop.permute.xlu0 %829
      %831 = vrot.lane.b32.xlu0 %v558, 16
      %v832 = vpop.permute.xlu0 %831
      %833 = vrot.lane.b32.xlu0 %v560, 16
      %v834 = vpop.permute.xlu0 %833
      %835 = vrot.lane.b32.xlu0 %v796, 16
      %v836 = vpop.permute.xlu0 %835
      %837 = vrot.lane.b32.xlu0 %v798, 16
      %v838 = vpop.permute.xlu0 %837
      %v859 = vrot.slane %v476, 2
      %v860 = vrot.slane %v428, 2
      %v861 = vsel %vm621, %v859, %v860
      %v862 = vrot.slane %v488, 2
      %v863 = vsel %vm621, %v860, %v862
      %864 = vrot.lane.b32.xlu0 %v629, 20
      %v865 = vpop.permute.xlu0 %864
      %866 = vrot.lane.b32.xlu0 %v631, 20
      %v867 = vpop.permute.xlu0 %866
      %868 = vrot.lane.b32.xlu0 %v634, 20
      %v869 = vpop.permute.xlu0 %868
      %870 = vrot.lane.b32.xlu0 %v636, 20
      %v871 = vpop.permute.xlu0 %870
      %872 = vrot.lane.b32.xlu0 %v639, 20
      %v873 = vpop.permute.xlu0 %872
      %874 = vrot.lane.b32.xlu0 %v641, 20
      %v875 = vpop.permute.xlu0 %874
      %876 = vrot.lane.b32.xlu0 %v644, 20
      %v877 = vpop.permute.xlu0 %876
      %878 = vrot.lane.b32.xlu0 %v646, 20
      %v879 = vpop.permute.xlu0 %878
      %880 = vrot.lane.b32.xlu0 %v649, 20
      %v881 = vpop.permute.xlu0 %880
      %882 = vrot.lane.b32.xlu0 %v651, 20
      %v883 = vpop.permute.xlu0 %882
      %884 = vrot.lane.b32.xlu0 %v654, 20
      %v885 = vpop.permute.xlu0 %884
      %886 = vrot.lane.b32.xlu0 %v656, 20
      %v887 = vpop.permute.xlu0 %886
      %888 = vrot.lane.b32.xlu0 %v659, 20
      %v889 = vpop.permute.xlu0 %888
      %890 = vrot.lane.b32.xlu0 %v661, 20
      %v891 = vpop.permute.xlu0 %890
      %892 = vrot.lane.b32.xlu0 %v664, 20
      %v893 = vpop.permute.xlu0 %892
      %894 = vrot.lane.b32.xlu0 %v666, 20
      %v895 = vpop.permute.xlu0 %894
      %896 = vrot.lane.b32.xlu0 %v669, 20
      %v897 = vpop.permute.xlu0 %896
      %898 = vrot.lane.b32.xlu0 %v671, 20
      %v899 = vpop.permute.xlu0 %898
      %900 = vrot.lane.b32.xlu0 %v861, 20
      %v901 = vpop.permute.xlu0 %900
      %902 = vrot.lane.b32.xlu0 %v863, 20
      %v903 = vpop.permute.xlu0 %902
      %925 = vrot.lane.b32.xlu0 %v468, 24
      %v926 = vpop.permute.xlu0 %925
      %927 = vrot.lane.b32.xlu0 %v404, 24
      %v928 = vpop.permute.xlu0 %927
      %929 = vrot.lane.b32.xlu0 %v469, 24
      %v930 = vpop.permute.xlu0 %929
      %931 = vrot.lane.b32.xlu0 %v407, 24
      %v932 = vpop.permute.xlu0 %931
      %933 = vrot.lane.b32.xlu0 %v470, 24
      %v934 = vpop.permute.xlu0 %933
      %935 = vrot.lane.b32.xlu0 %v410, 24
      %v936 = vpop.permute.xlu0 %935
      %937 = vrot.lane.b32.xlu0 %v471, 24
      %v938 = vpop.permute.xlu0 %937
      %939 = vrot.lane.b32.xlu0 %v413, 24
      %v940 = vpop.permute.xlu0 %939
      %941 = vrot.lane.b32.xlu0 %v472, 24
      %v942 = vpop.permute.xlu0 %941
      %943 = vrot.lane.b32.xlu0 %v416, 24
      %v944 = vpop.permute.xlu0 %943
      %945 = vrot.lane.b32.xlu0 %v473, 24
      %v946 = vpop.permute.xlu0 %945
      %947 = vrot.lane.b32.xlu0 %v419, 24
      %v948 = vpop.permute.xlu0 %947
      %949 = vrot.lane.b32.xlu0 %v474, 24
      %v950 = vpop.permute.xlu0 %949
      %951 = vrot.lane.b32.xlu0 %v422, 24
      %v952 = vpop.permute.xlu0 %951
      %953 = vrot.lane.b32.xlu0 %v475, 24
      %v954 = vpop.permute.xlu0 %953
      %955 = vrot.lane.b32.xlu0 %v425, 24
      %v956 = vpop.permute.xlu0 %955
      %957 = vrot.lane.b32.xlu0 %v476, 24
      %v958 = vpop.permute.xlu0 %957
      %959 = vrot.lane.b32.xlu0 %v428, 24
      %v960 = vpop.permute.xlu0 %959
      %961 = vrot.lane.b32.xlu0 %v477, 24
      %v962 = vpop.permute.xlu0 %961
      %963 = vrot.lane.b32.xlu0 %v431, 24
      %v964 = vpop.permute.xlu0 %963
      %v986 = vrot.slane %v477, 1
      %v987 = vrot.slane %v431, 1
      %v988 = vsel %vm510, %v986, %v987
      %v989 = vrot.slane %v489, 1
      %v990 = vsel %vm510, %v987, %v989
      %991 = vrot.lane.b32.xlu0 %v523, 28
      %v992 = vpop.permute.xlu0 %991
      %993 = vrot.lane.b32.xlu0 %v525, 28
      %v994 = vpop.permute.xlu0 %993
      %995 = vrot.lane.b32.xlu0 %v528, 28
      %v996 = vpop.permute.xlu0 %995
      %997 = vrot.lane.b32.xlu0 %v530, 28
      %v998 = vpop.permute.xlu0 %997
      %999 = vrot.lane.b32.xlu0 %v533, 28
      %v1000 = vpop.permute.xlu0 %999
      %1001 = vrot.lane.b32.xlu0 %v535, 28
      %v1002 = vpop.permute.xlu0 %1001
      %1003 = vrot.lane.b32.xlu0 %v538, 28
      %v1004 = vpop.permute.xlu0 %1003
      %1005 = vrot.lane.b32.xlu0 %v540, 28
      %v1006 = vpop.permute.xlu0 %1005
      %1007 = vrot.lane.b32.xlu0 %v543, 28
      %v1008 = vpop.permute.xlu0 %1007
      %1009 = vrot.lane.b32.xlu0 %v545, 28
      %v1010 = vpop.permute.xlu0 %1009
      %1011 = vrot.lane.b32.xlu0 %v548, 28
      %v1012 = vpop.permute.xlu0 %1011
      %1013 = vrot.lane.b32.xlu0 %v550, 28
      %v1014 = vpop.permute.xlu0 %1013
      %1015 = vrot.lane.b32.xlu0 %v553, 28
      %v1016 = vpop.permute.xlu0 %1015
      %1017 = vrot.lane.b32.xlu0 %v555, 28
      %v1018 = vpop.permute.xlu0 %1017
      %1019 = vrot.lane.b32.xlu0 %v558, 28
      %v1020 = vpop.permute.xlu0 %1019
      %1021 = vrot.lane.b32.xlu0 %v560, 28
      %v1022 = vpop.permute.xlu0 %1021
      %1023 = vrot.lane.b32.xlu0 %v796, 28
      %v1024 = vpop.permute.xlu0 %1023
      %1025 = vrot.lane.b32.xlu0 %v798, 28
      %v1026 = vpop.permute.xlu0 %1025
      %1027 = vrot.lane.b32.xlu0 %v988, 28
      %v1028 = vpop.permute.xlu0 %1027
      %1029 = vrot.lane.b32.xlu0 %v990, 28
      %v1030 = vpop.permute.xlu0 %1029
      %v1051 = vrot.slane %v477, 2
      %v1052 = vrot.slane %v431, 2
      %v1053 = vsel %vm621, %v1051, %v1052
      %v1054 = vrot.slane %v489, 2
      %v1055 = vsel %vm621, %v1052, %v1054
      %1056 = vrot.lane.b32.xlu0 %v634, 32
      %v1057 = vpop.permute.xlu0 %1056
      %1058 = vrot.lane.b32.xlu0 %v636, 32
      %v1059 = vpop.permute.xlu0 %1058
      %1060 = vrot.lane.b32.xlu0 %v639, 32
      %v1061 = vpop.permute.xlu0 %1060
      %1062 = vrot.lane.b32.xlu0 %v641, 32
      %v1063 = vpop.permute.xlu0 %1062
      %1064 = vrot.lane.b32.xlu0 %v644, 32
      %v1065 = vpop.permute.xlu0 %1064
      %1066 = vrot.lane.b32.xlu0 %v646, 32
      %v1067 = vpop.permute.xlu0 %1066
      %1068 = vrot.lane.b32.xlu0 %v649, 32
      %v1069 = vpop.permute.xlu0 %1068
      %1070 = vrot.lane.b32.xlu0 %v651, 32
      %v1071 = vpop.permute.xlu0 %1070
      %1072 = vrot.lane.b32.xlu0 %v654, 32
      %v1073 = vpop.permute.xlu0 %1072
      %1074 = vrot.lane.b32.xlu0 %v656, 32
      %v1075 = vpop.permute.xlu0 %1074
      %1076 = vrot.lane.b32.xlu0 %v659, 32
      %v1077 = vpop.permute.xlu0 %1076
      %1078 = vrot.lane.b32.xlu0 %v661, 32
      %v1079 = vpop.permute.xlu0 %1078
      %1080 = vrot.lane.b32.xlu0 %v664, 32
      %v1081 = vpop.permute.xlu0 %1080
      %1082 = vrot.lane.b32.xlu0 %v666, 32
      %v1083 = vpop.permute.xlu0 %1082
      %1084 = vrot.lane.b32.xlu0 %v669, 32
      %v1085 = vpop.permute.xlu0 %1084
      %1086 = vrot.lane.b32.xlu0 %v671, 32
      %v1087 = vpop.permute.xlu0 %1086
      %1088 = vrot.lane.b32.xlu0 %v861, 32
      %v1089 = vpop.permute.xlu0 %1088
      %1090 = vrot.lane.b32.xlu0 %v863, 32
      %v1091 = vpop.permute.xlu0 %1090
      %1092 = vrot.lane.b32.xlu0 %v1053, 32
      %v1093 = vpop.permute.xlu0 %1092
      %1094 = vrot.lane.b32.xlu0 %v1055, 32
      %v1095 = vpop.permute.xlu0 %1094
      %vm1116 = vcmask 31744
      %v1117 = vsel %vm1116, %v466, %v562
      %v1118 = vsel %vm1116, %v398, %v564
      %v1119 = vsel %vm1116, %v467, %v566
      %v1120 = vsel %vm1116, %v401, %v568
      %v1121 = vsel %vm1116, %v468, %v570
      %v1122 = vsel %vm1116, %v404, %v572
      %v1123 = vsel %vm1116, %v469, %v574
      %v1124 = vsel %vm1116, %v407, %v576
      %v1125 = vsel %vm1116, %v470, %v578
      %v1126 = vsel %vm1116, %v410, %v580
      %v1127 = vsel %vm1116, %v471, %v582
      %v1128 = vsel %vm1116, %v413, %v584
      %v1129 = vsel %vm1116, %v472, %v586
      %v1130 = vsel %vm1116, %v416, %v588
      %v1131 = vsel %vm1116, %v473, %v590
      %v1132 = vsel %vm1116, %v419, %v592
      %v1133 = vsel %vm1116, %v474, %v594
      %v1134 = vsel %vm1116, %v422, %v596
      %v1135 = vsel %vm1116, %v475, %v598
      %v1136 = vsel %vm1116, %v425, %v600
      %vm1137 = vcmask 64512
      %v1138 = vsel %vm1137, %v1117, %v673
      %v1139 = vsel %vm1137, %v1118, %v675
      %v1140 = vsel %vm1137, %v1119, %v677
      %v1141 = vsel %vm1137, %v1120, %v679
      %v1142 = vsel %vm1137, %v1121, %v681
      %v1143 = vsel %vm1137, %v1122, %v683
      %v1144 = vsel %vm1137, %v1123, %v685
      %v1145 = vsel %vm1137, %v1124, %v687
      %v1146 = vsel %vm1137, %v1125, %v689
      %v1147 = vsel %vm1137, %v1126, %v691
      %v1148 = vsel %vm1137, %v1127, %v693
      %v1149 = vsel %vm1137, %v1128, %v695
      %v1150 = vsel %vm1137, %v1129, %v697
      %v1151 = vsel %vm1137, %v1130, %v699
      %v1152 = vsel %vm1137, %v1131, %v701
      %v1153 = vsel %vm1137, %v1132, %v703
      %v1154 = vsel %vm1137, %v1133, %v705
      %v1155 = vsel %vm1137, %v1134, %v707
      %v1156 = vsel %vm1137, %v1135, %v709
      %v1157 = vsel %vm1137, %v1136, %v711
      %vm1158 = vcmask 97280
      %v1159 = vsel %vm1158, %v1138, %v734
      %v1160 = vsel %vm1158, %v1139, %v736
      %v1161 = vsel %vm1158, %v1140, %v738
      %v1162 = vsel %vm1158, %v1141, %v740
      %v1163 = vsel %vm1158, %v1142, %v742
      %v1164 = vsel %vm1158, %v1143, %v744
      %v1165 = vsel %vm1158, %v1144, %v746
      %v1166 = vsel %vm1158, %v1145, %v748
      %v1167 = vsel %vm1158, %v1146, %v750
      %v1168 = vsel %vm1158, %v1147, %v752
      %v1169 = vsel %vm1158, %v1148, %v754
      %v1170 = vsel %vm1158, %v1149, %v756
      %v1171 = vsel %vm1158, %v1150, %v758
      %v1172 = vsel %vm1158, %v1151, %v760
      %v1173 = vsel %vm1158, %v1152, %v762
      %v1174 = vsel %vm1158, %v1153, %v764
      %v1175 = vsel %vm1158, %v1154, %v766
      %v1176 = vsel %vm1158, %v1155, %v768
      %v1177 = vsel %vm1158, %v1156, %v770
      %v1178 = vsel %vm1158, %v1157, %v772
      %vm1179 = vcmask 130048
      %v1180 = vsel %vm1179, %v1159, %v800
      %v1181 = vsel %vm1179, %v1160, %v802
      %v1182 = vsel %vm1179, %v1161, %v804
      %v1183 = vsel %vm1179, %v1162, %v806
      %v1184 = vsel %vm1179, %v1163, %v808
      %v1185 = vsel %vm1179, %v1164, %v810
      %v1186 = vsel %vm1179, %v1165, %v812
      %v1187 = vsel %vm1179, %v1166, %v814
      %v1188 = vsel %vm1179, %v1167, %v816
      %v1189 = vsel %vm1179, %v1168, %v818
      %v1190 = vsel %vm1179, %v1169, %v820
      %v1191 = vsel %vm1179, %v1170, %v822
      %v1192 = vsel %vm1179, %v1171, %v824
      %v1193 = vsel %vm1179, %v1172, %v826
      %v1194 = vsel %vm1179, %v1173, %v828
      %v1195 = vsel %vm1179, %v1174, %v830
      %v1196 = vsel %vm1179, %v1175, %v832
      %v1197 = vsel %vm1179, %v1176, %v834
      %v1198 = vsel %vm1179, %v1177, %v836
      %v1199 = vsel %vm1179, %v1178, %v838
      %vm1200 = vcmask 162816
      %v1201 = vsel %vm1200, %v1180, %v865
      %v1202 = vsel %vm1200, %v1181, %v867
      %v1203 = vsel %vm1200, %v1182, %v869
      %v1204 = vsel %vm1200, %v1183, %v871
      %v1205 = vsel %vm1200, %v1184, %v873
      %v1206 = vsel %vm1200, %v1185, %v875
      %v1207 = vsel %vm1200, %v1186, %v877
      %v1208 = vsel %vm1200, %v1187, %v879
      %v1209 = vsel %vm1200, %v1188, %v881
      %v1210 = vsel %vm1200, %v1189, %v883
      %v1211 = vsel %vm1200, %v1190, %v885
      %v1212 = vsel %vm1200, %v1191, %v887
      %v1213 = vsel %vm1200, %v1192, %v889
      %v1214 = vsel %vm1200, %v1193, %v891
      %v1215 = vsel %vm1200, %v1194, %v893
      %v1216 = vsel %vm1200, %v1195, %v895
      %v1217 = vsel %vm1200, %v1196, %v897
      %v1218 = vsel %vm1200, %v1197, %v899
      %v1219 = vsel %vm1200, %v1198, %v901
      %v1220 = vsel %vm1200, %v1199, %v903
      %vm1221 = vcmask 195584
      %v1222 = vsel %vm1221, %v1201, %v926
      %v1223 = vsel %vm1221, %v1202, %v928
      %v1224 = vsel %vm1221, %v1203, %v930
      %v1225 = vsel %vm1221, %v1204, %v932
      %v1226 = vsel %vm1221, %v1205, %v934
      %v1227 = vsel %vm1221, %v1206, %v936
      %v1228 = vsel %vm1221, %v1207, %v938
      %v1229 = vsel %vm1221, %v1208, %v940
      %v1230 = vsel %vm1221, %v1209, %v942
      %v1231 = vsel %vm1221, %v1210, %v944
      %v1232 = vsel %vm1221, %v1211, %v946
      %v1233 = vsel %vm1221, %v1212, %v948
      %v1234 = vsel %vm1221, %v1213, %v950
      %v1235 = vsel %vm1221, %v1214, %v952
      %v1236 = vsel %vm1221, %v1215, %v954
      %v1237 = vsel %vm1221, %v1216, %v956
      %v1238 = vsel %vm1221, %v1217, %v958
      %v1239 = vsel %vm1221, %v1218, %v960
      %v1240 = vsel %vm1221, %v1219, %v962
      %v1241 = vsel %vm1221, %v1220, %v964
      %vm1242 = vcmask 228352
      %v1243 = vsel %vm1242, %v1222, %v992
      %v1244 = vsel %vm1242, %v1223, %v994
      %v1245 = vsel %vm1242, %v1224, %v996
      %v1246 = vsel %vm1242, %v1225, %v998
      %v1247 = vsel %vm1242, %v1226, %v1000
      %v1248 = vsel %vm1242, %v1227, %v1002
      %v1249 = vsel %vm1242, %v1228, %v1004
      %v1250 = vsel %vm1242, %v1229, %v1006
      %v1251 = vsel %vm1242, %v1230, %v1008
      %v1252 = vsel %vm1242, %v1231, %v1010
      %v1253 = vsel %vm1242, %v1232, %v1012
      %v1254 = vsel %vm1242, %v1233, %v1014
      %v1255 = vsel %vm1242, %v1234, %v1016
      %v1256 = vsel %vm1242, %v1235, %v1018
      %v1257 = vsel %vm1242, %v1236, %v1020
      %v1258 = vsel %vm1242, %v1237, %v1022
      %v1259 = vsel %vm1242, %v1238, %v1024
      %v1260 = vsel %vm1242, %v1239, %v1026
      %v1261 = vsel %vm1242, %v1240, %v1028
      %v1262 = vsel %vm1242, %v1241, %v1030
      %vm1263 = vcmask 261120
      %v1264 = vsel %vm1263, %v1243, %v1057
      %v1265 = vsel %vm1263, %v1244, %v1059
      %v1266 = vsel %vm1263, %v1245, %v1061
      %v1267 = vsel %vm1263, %v1246, %v1063
      %v1268 = vsel %vm1263, %v1247, %v1065
      %v1269 = vsel %vm1263, %v1248, %v1067
      %v1270 = vsel %vm1263, %v1249, %v1069
      %v1271 = vsel %vm1263, %v1250, %v1071
      %v1272 = vsel %vm1263, %v1251, %v1073
      %v1273 = vsel %vm1263, %v1252, %v1075
      %v1274 = vsel %vm1263, %v1253, %v1077
      %v1275 = vsel %vm1263, %v1254, %v1079
      %v1276 = vsel %vm1263, %v1255, %v1081
      %v1277 = vsel %vm1263, %v1256, %v1083
      %v1278 = vsel %vm1263, %v1257, %v1085
      %v1279 = vsel %vm1263, %v1258, %v1087
      %v1280 = vsel %vm1263, %v1259, %v1089
      %v1281 = vsel %vm1263, %v1260, %v1091
      %v1282 = vsel %vm1263, %v1261, %v1093
      %v1283 = vsel %vm1263, %v1262, %v1095
      %v1285 = vlaneseq
      %v1286 = vshrl.u32 %v1285, 7
      %v1287 = vsub.s32 0, %v1286
      %v1288 = vrot.slane %v369, %v1287
      %vm1290 = vcmask 293888
      %v1292 = vsel %vm1290, %v1264, 0
      %v1295 = vsel %vm1290, %v1265, 0
      %v1298 = vsel %vm1290, %v1266, 0
      %v1301 = vsel %vm1290, %v1267, 0
      %v1304 = vsel %vm1290, %v1268, 0
      %v1307 = vsel %vm1290, %v1269, 0
      %v1310 = vsel %vm1290, %v1270, 0
      %v1313 = vsel %vm1290, %v1271, 0
      %v1316 = vsel %vm1290, %v1272, 0
      %v1319 = vsel %vm1290, %v1273, 0
      %v1322 = vsel %vm1290, %v1274, 0
      %v1325 = vsel %vm1290, %v1275, 0
      %v1328 = vsel %vm1290, %v1276, 0
      %v1331 = vsel %vm1290, %v1277, 0
      %v1334 = vsel %vm1290, %v1278, 0
      %v1337 = vsel %vm1290, %v1279, 0
      %v1340 = vsel %vm1290, %v1280, 0
      %v1343 = vsel %vm1290, %v1281, 0
      %v1346 = vsel %vm1290, %v1282, 0
      %v1349 = vsel %vm1290, %v1283, 0
      %vm1351 = vcmask 1043456
      %v1353 = vsel %vm1351, %v363, 0
      %1355 = vmatprep.subr.mxu0 0.0
      %1356 = vmatpush1.msra.mxu0 %v359
      %1357 = vmatprep.subr.mxu0 0.0
      %1358 = vmatpush1.msra.mxu0 %v360
      %1359 = vmatprep.subr.mxu0 0.0
      %1360 = vmatpush1.msra.mxu0 %v361
      %1361 = vmatprep.subr.mxu0 0.0
      %1362 = vmatpush1.msra.mxu0 %v362
      %1363 = vmatprep.subr.mxu0 0.0
      %1364 = vmatpush1.msra.mxu0 %v1353
      %1365 = vmatprep.subr.mxu0 0.0
      %1366 = vmatpush1.msra.mxu0 0.0
      %1367 = vmatprep.subr.mxu0 0.0
      %1368 = vmatpush1.msra.mxu0 0.0
      %1369 = vmatprep.subr.mxu0 0.0
      %1370 = vmatpush1.msra.mxu0 0.0
      %1371 = vmatprep.subr.mxu0 0.0
      %1372 = vmatpush1.msra.mxu0 0.0
      %1373 = vmatprep.subr.mxu0 0.0
      %1374 = vmatpush1.msra.mxu0 0.0
      %1375 = vmatprep.subr.mxu0 0.0
      %1376 = vmatpush1.msra.mxu0 0.0
      %1377 = vmatprep.subr.mxu0 0.0
      %1378 = vmatpush1.msra.mxu0 0.0
      %1379 = vmatprep.subr.mxu0 0.0
      %1380 = vmatpush1.msra.mxu0 0.0
      %1381 = vmatprep.subr.mxu0 0.0
      %1382 = vmatpush1.msra.mxu0 0.0
      %1383 = vmatprep.subr.mxu0 0.0
      %1384 = vmatpush1.msra.mxu0 0.0
      %1385 = vmatprep.subr.mxu0 0.0
      %1386 = vmatpush1.msra.mxu0 0.0
      %1387 = vmatprep.subr.mxu0 0.0
      %1388 = vmatpush1.msra.mxu0 0.0
      %1389 = vmatprep.subr.mxu0 0.0
      %1390 = vmatpush1.msra.mxu0 0.0
      %1391 = vmatprep.subr.mxu0 0.0
      %1392 = vmatpush1.msra.mxu0 0.0
      %1393 = vmatprep.subr.mxu0 0.0
      %1394 = vmatpush1.msra.mxu0 0.0
      %1395 = vmatprep.subr.mxu0 0.0
      %1396 = vmatpush1.msra.mxu0 0.0
      %1397 = vmatprep.subr.mxu0 0.0
      %1398 = vmatpush1.msra.mxu0 0.0
      %1399 = vmatprep.subr.mxu0 0.0
      %1400 = vmatpush1.msra.mxu0 0.0
      %1401 = vmatprep.subr.mxu0 0.0
      %1402 = vmatpush1.msra.mxu0 0.0
      %1403 = vmatprep.subr.mxu0 0.0
      %1404 = vmatpush1.msra.mxu0 0.0
      %1405 = vmatprep.subr.mxu0 0.0
      %1406 = vmatpush1.msra.mxu0 0.0
      %1407 = vmatprep.subr.mxu0 0.0
      %1408 = vmatpush1.msra.mxu0 0.0
      %1409 = vmatprep.subr.mxu0 0.0
      %1410 = vmatpush1.msra.mxu0 0.0
      %1411 = vmatprep.subr.mxu0 0.0
      %1412 = vmatpush1.msra.mxu0 0.0
      %1413 = vmatprep.subr.mxu0 0.0
      %1414 = vmatpush1.msra.mxu0 0.0
      %1415 = vmatprep.subr.mxu0 0.0
      %1416 = vmatpush1.msra.mxu0 0.0
      %1417 = vmatprep.subr.mxu0 0.0
      %1418 = vmatpush1.msra.mxu0 0.0
      %1419 = vmatprep.mubr.f32.mxu0 0.0
      %1420 = vmatmul.mubr.f32.gmra.mrb[0].mxu0 %v1292
      %v1421 = vpop.f32.mrb[0].mxu0
      %v1422 = vadd.f32 %v1288, %v1421
      %v1423 = vpop.f32.mrb[0].mxu0
      %1424 = vmatprep.mubr.f32.mxu0 0.0
      %1425 = vmatmul.mubr.f32.gmra.mrb[0].mxu0 %v1295
      %v1426 = vpop.f32.mrb[0].mxu0
      %v1427 = vadd.f32 %v1288, %v1426
      %v1428 = vpop.f32.mrb[0].mxu0
      %1429 = vmatprep.mubr.f32.mxu0 0.0
      %1430 = vmatmul.mubr.f32.gmra.mrb[0].mxu0 %v1298
      %v1431 = vpop.f32.mrb[0].mxu0
      %v1432 = vadd.f32 %v1288, %v1431
      %v1433 = vpop.f32.mrb[0].mxu0
      %1434 = vmatprep.mubr.f32.mxu0 0.0
      %1435 = vmatmul.mubr.f32.gmra.mrb[0].mxu0 %v1301
      %v1436 = vpop.f32.mrb[0].mxu0
      %v1437 = vadd.f32 %v1288, %v1436
      %v1438 = vpop.f32.mrb[0].mxu0
      %1439 = vmatprep.mubr.f32.mxu0 0.0
      %1440 = vmatmul.mubr.f32.gmra.mrb[0].mxu0 %v1304
      %v1441 = vpop.f32.mrb[0].mxu0
      %v1442 = vadd.f32 %v1288, %v1441
      %v1443 = vpop.f32.mrb[0].mxu0
      %1444 = vmatprep.mubr.f32.mxu0 0.0
      %1445 = vmatmul.mubr.f32.gmra.mrb[0].mxu0 %v1307
      %v1446 = vpop.f32.mrb[0].mxu0
      %v1447 = vadd.f32 %v1288, %v1446
      %v1448 = vpop.f32.mrb[0].mxu0
      %1449 = vmatprep.mubr.f32.mxu0 0.0
      %1450 = vmatmul.mubr.f32.gmra.mrb[0].mxu0 %v1310
      %v1451 = vpop.f32.mrb[0].mxu0
      %v1452 = vadd.f32 %v1288, %v1451
      %v1453 = vpop.f32.mrb[0].mxu0
      %1454 = vmatprep.mubr.f32.mxu0 0.0
      %1455 = vmatmul.mubr.f32.gmra.mrb[0].mxu0 %v1313
      %v1456 = vpop.f32.mrb[0].mxu0
      %v1457 = vadd.f32 %v1288, %v1456
      %v1458 = vpop.f32.mrb[0].mxu0
      %1459 = vmatprep.mubr.f32.mxu0 0.0
      %1460 = vmatmul.mubr.f32.gmra.mrb[0].mxu0 %v1316
      %v1461 = vpop.f32.mrb[0].mxu0
      %v1462 = vadd.f32 %v1288, %v1461
      %v1463 = vpop.f32.mrb[0].mxu0
      %1464 = vmatprep.mubr.f32.mxu0 0.0
      %1465 = vmatmul.mubr.f32.gmra.mrb[0].mxu0 %v1319
      %v1466 = vpop.f32.mrb[0].mxu0
      %v1467 = vadd.f32 %v1288, %v1466
      %v1468 = vpop.f32.mrb[0].mxu0
      %1469 = vmatprep.mubr.f32.mxu0 0.0
      %1470 = vmatmul.mubr.f32.gmra.mrb[0].mxu0 %v1322
      %v1471 = vpop.f32.mrb[0].mxu0
      %v1472 = vadd.f32 %v1288, %v1471
      %v1473 = vpop.f32.mrb[0].mxu0
      %1474 = vmatprep.mubr.f32.mxu0 0.0
      %1475 = vmatmul.mubr.f32.gmra.mrb[0].mxu0 %v1325
      %v1476 = vpop.f32.mrb[0].mxu0
      %v1477 = vadd.f32 %v1288, %v1476
      %v1478 = vpop.f32.mrb[0].mxu0
      %1479 = vmatprep.mubr.f32.mxu0 0.0
      %1480 = vmatmul.mubr.f32.gmra.mrb[0].mxu0 %v1328
      %v1481 = vpop.f32.mrb[0].mxu0
      %v1482 = vadd.f32 %v1288, %v1481
      %v1483 = vpop.f32.mrb[0].mxu0
      %1484 = vmatprep.mubr.f32.mxu0 0.0
      %1485 = vmatmul.mubr.f32.gmra.mrb[0].mxu0 %v1331
      %v1486 = vpop.f32.mrb[0].mxu0
      %v1487 = vadd.f32 %v1288, %v1486
      %v1488 = vpop.f32.mrb[0].mxu0
      %1489 = vmatprep.mubr.f32.mxu0 0.0
      %1490 = vmatmul.mubr.f32.gmra.mrb[0].mxu0 %v1334
      %v1491 = vpop.f32.mrb[0].mxu0
      %v1492 = vadd.f32 %v1288, %v1491
      %v1493 = vpop.f32.mrb[0].mxu0
      %1494 = vmatprep.mubr.f32.mxu0 0.0
      %1495 = vmatmul.mubr.f32.gmra.mrb[0].mxu0 %v1337
      %v1496 = vpop.f32.mrb[0].mxu0
      %v1497 = vadd.f32 %v1288, %v1496
      %v1498 = vpop.f32.mrb[0].mxu0
      %1499 = vmatprep.mubr.f32.mxu0 0.0
      %1500 = vmatmul.mubr.f32.gmra.mrb[0].mxu0 %v1340
      %v1501 = vpop.f32.mrb[0].mxu0
      %v1502 = vadd.f32 %v1288, %v1501
      %v1503 = vpop.f32.mrb[0].mxu0
      %1504 = vmatprep.mubr.f32.mxu0 0.0
      %1505 = vmatmul.mubr.f32.gmra.mrb[0].mxu0 %v1343
      %v1506 = vpop.f32.mrb[0].mxu0
      %v1507 = vadd.f32 %v1288, %v1506
      %v1508 = vpop.f32.mrb[0].mxu0
      %1509 = vmatprep.mubr.f32.mxu0 0.0
      %1510 = vmatmul.mubr.f32.gmra.mrb[0].mxu0 %v1346
      %v1511 = vpop.f32.mrb[0].mxu0
      %v1512 = vadd.f32 %v1288, %v1511
      %v1513 = vpop.f32.mrb[0].mxu0
      %1514 = vmatprep.mubr.f32.mxu0 0.0
      %1515 = vmatmul.mubr.f32.gmra.mrb[0].mxu0 %v1349
      %v1516 = vpop.f32.mrb[0].mxu0
      %v1517 = vadd.f32 %v1288, %v1516
      %v1518 = vpop.f32.mrb[0].mxu0
      %1519 = vdwg.mxu0
      %v1520 = vmax.f32 %v1422, 0.0
      %v1521 = vmax.f32 %v1427, 0.0
      %v1522 = vmax.f32 %v1432, 0.0
      %v1523 = vmax.f32 %v1437, 0.0
      %v1524 = vmax.f32 %v1442, 0.0
      %v1525 = vmax.f32 %v1447, 0.0
      %v1526 = vmax.f32 %v1452, 0.0
      %v1527 = vmax.f32 %v1457, 0.0
      %v1528 = vmax.f32 %v1462, 0.0
      %v1529 = vmax.f32 %v1467, 0.0
      %v1530 = vmax.f32 %v1472, 0.0
      %v1531 = vmax.f32 %v1477, 0.0
      %v1532 = vmax.f32 %v1482, 0.0
      %v1533 = vmax.f32 %v1487, 0.0
      %v1534 = vmax.f32 %v1492, 0.0
      %v1535 = vmax.f32 %v1497, 0.0
      %v1536 = vmax.f32 %v1502, 0.0
      %v1537 = vmax.f32 %v1507, 0.0
      %v1538 = vmax.f32 %v1512, 0.0
      %v1539 = vmax.f32 %v1517, 0.0
      %v1540 = vlaneseq
      %v1541 = vshrl.u32 %v1540, 7
      %v1542 = vadd.s32 %v1541, 8
      %s1543 = smul.u32 %s22, 8
      %s1544 = ssub.s32 %s1543, 1
      %v1545 = vstv %s1544
      %v1546 = vadd.s32 %v1545, %v1541
      %v1547 = vadd.s32 %v1545, %v1542
      %vm1548 = vcmp.ge.s32.totalorder %v1546, 0
      %vm1549 = vcmp.ge.s32.totalorder %v1547, 0
      %vm1550 = vcmp.lt.s32.totalorder %v1546, 16
      %vm1551 = vcmp.lt.s32.totalorder %v1547, 16
      %vm1552 = vmand %vm1548, %vm1550
      %vm1553 = vmand %vm1549, %vm1551
      %v1554 = vsel %vm1552, 1, 0
      %v1555 = vsel %vm1553, 1, 0
      %v1556 = vlaneseq
      %v1557 = vshrl.u32 %v1556, 7
      %v1558 = vsub.s32 0, %v1557
      %v1559 = vrot.slane %v1554, %v1558
      %v1560 = vlaneseq
      %v1561 = vshrl.u32 %v1560, 7
      %v1562 = vsub.s32 1, %v1561
      %v1563 = vrot.slane %v1554, %v1562
      %v1564 = vlaneseq
      %v1565 = vshrl.u32 %v1564, 7
      %v1566 = vsub.s32 2, %v1565
      %v1567 = vrot.slane %v1554, %v1566
      %v1568 = vlaneseq
      %v1569 = vshrl.u32 %v1568, 7
      %v1570 = vsub.s32 3, %v1569
      %v1571 = vrot.slane %v1554, %v1570
      %v1572 = vlaneseq
      %v1573 = vshrl.u32 %v1572, 7
      %v1574 = vsub.s32 4, %v1573
      %v1575 = vrot.slane %v1554, %v1574
      %v1576 = vlaneseq
      %v1577 = vshrl.u32 %v1576, 7
      %v1578 = vsub.s32 5, %v1577
      %v1579 = vrot.slane %v1554, %v1578
      %v1580 = vlaneseq
      %v1581 = vshrl.u32 %v1580, 7
      %v1582 = vsub.s32 6, %v1581
      %v1583 = vrot.slane %v1554, %v1582
      %v1584 = vlaneseq
      %v1585 = vshrl.u32 %v1584, 7
      %v1586 = vsub.s32 7, %v1585
      %v1587 = vrot.slane %v1554, %v1586
      %v1588 = vlaneseq
      %v1589 = vshrl.u32 %v1588, 7
      %v1590 = vsub.s32 0, %v1589
      %v1591 = vrot.slane %v1555, %v1590
      %v1592 = vlaneseq
      %v1593 = vshrl.u32 %v1592, 7
      %v1594 = vsub.s32 1, %v1593
      %v1595 = vrot.slane %v1555, %v1594
      %vm1596 = vcmp.ne.s32.totalorder %v1559, 0
      %vm1597 = vcmp.ne.s32.totalorder %v1563, 0
      %vm1598 = vcmp.ne.s32.totalorder %v1567, 0
      %vm1599 = vcmp.ne.s32.totalorder %v1571, 0
      %vm1600 = vcmp.ne.s32.totalorder %v1575, 0
      %vm1601 = vcmp.ne.s32.totalorder %v1579, 0
      %vm1602 = vcmp.ne.s32.totalorder %v1583, 0
      %vm1603 = vcmp.ne.s32.totalorder %v1587, 0
      %vm1604 = vcmp.ne.s32.totalorder %v1591, 0
      %vm1605 = vcmp.ne.s32.totalorder %v1595, 0
      %v1606 = vsel %vm1596, 1, 0
      %v1607 = vsel %vm1597, 1, 0
      %v1608 = vsel %vm1598, 1, 0
      %v1609 = vsel %vm1599, 1, 0
      %v1610 = vsel %vm1600, 1, 0
      %v1611 = vsel %vm1601, 1, 0
      %v1612 = vsel %vm1602, 1, 0
      %v1613 = vsel %vm1603, 1, 0
      %v1614 = vsel %vm1604, 1, 0
      %v1615 = vsel %vm1605, 1, 0
      %vm1616 = vcmp.eq.s32.totalorder %v1606, 1
      %vm1617 = vcmp.eq.s32.totalorder %v1607, 1
      %vm1618 = vcmp.eq.s32.totalorder %v1608, 1
      %vm1619 = vcmp.eq.s32.totalorder %v1609, 1
      %vm1620 = vcmp.eq.s32.totalorder %v1610, 1
      %vm1621 = vcmp.eq.s32.totalorder %v1611, 1
      %vm1622 = vcmp.eq.s32.totalorder %v1612, 1
      %vm1623 = vcmp.eq.s32.totalorder %v1613, 1
      %vm1624 = vcmp.eq.s32.totalorder %v1614, 1
      %vm1625 = vcmp.eq.s32.totalorder %v1615, 1
      %v1626 = vsel %vm1616, %v1520, 0.0
      %v1627 = vsel %vm1616, %v1521, 0.0
      %v1628 = vsel %vm1617, %v1522, 0.0
      %v1629 = vsel %vm1617, %v1523, 0.0
      %v1630 = vsel %vm1618, %v1524, 0.0
      %v1631 = vsel %vm1618, %v1525, 0.0
      %v1632 = vsel %vm1619, %v1526, 0.0
      %v1633 = vsel %vm1619, %v1527, 0.0
      %v1634 = vsel %vm1620, %v1528, 0.0
      %v1635 = vsel %vm1620, %v1529, 0.0
      %v1636 = vsel %vm1621, %v1530, 0.0
      %v1637 = vsel %vm1621, %v1531, 0.0
      %v1638 = vsel %vm1622, %v1532, 0.0
      %v1639 = vsel %vm1622, %v1533, 0.0
      %v1640 = vsel %vm1623, %v1534, 0.0
      %v1641 = vsel %vm1623, %v1535, 0.0
      %v1642 = vsel %vm1624, %v1536, 0.0
      %v1643 = vsel %vm1624, %v1537, 0.0
      %v1644 = vsel %vm1625, %v1538, 0.0
      %v1645 = vsel %vm1625, %v1539, 0.0
      %v1666 = vrot.slane %v1626, 7
      %v1667 = vrot.slane %v1627, 7
      %v1668 = vsel %vm395, %v1666, %v1667
      %v1669 = vrot.slane %v1628, 7
      %v1670 = vrot.slane %v1629, 7
      %v1671 = vsel %vm395, %v1669, %v1670
      %v1672 = vrot.slane %v1630, 7
      %v1673 = vrot.slane %v1631, 7
      %v1674 = vsel %vm395, %v1672, %v1673
      %v1675 = vrot.slane %v1632, 7
      %v1676 = vrot.slane %v1633, 7
      %v1677 = vsel %vm395, %v1675, %v1676
      %v1678 = vrot.slane %v1634, 7
      %v1679 = vrot.slane %v1635, 7
      %v1680 = vsel %vm395, %v1678, %v1679
      %v1681 = vrot.slane %v1636, 7
      %v1682 = vrot.slane %v1637, 7
      %v1683 = vsel %vm395, %v1681, %v1682
      %v1684 = vrot.slane %v1638, 7
      %v1685 = vrot.slane %v1639, 7
      %v1686 = vsel %vm395, %v1684, %v1685
      %v1687 = vrot.slane %v1640, 7
      %v1688 = vrot.slane %v1641, 7
      %v1689 = vsel %vm395, %v1687, %v1688
      %v1690 = vrot.slane %v1642, 7
      %v1691 = vrot.slane %v1643, 7
      %v1692 = vsel %vm395, %v1690, %v1691
      %v1693 = vrot.slane %v1644, 7
      %v1694 = vrot.slane %v1645, 7
      %v1695 = vsel %vm395, %v1693, %v1694
      %v1724 = vsel %vm395, 0.0, %v1666
      %v1725 = vsel %vm395, 0.0, %v1669
      %v1726 = vsel %vm395, 0.0, %v1672
      %v1727 = vsel %vm395, 0.0, %v1675
      %v1728 = vsel %vm395, 0.0, %v1678
      %v1729 = vsel %vm395, 0.0, %v1681
      %v1730 = vsel %vm395, 0.0, %v1684
      %v1731 = vsel %vm395, 0.0, %v1687
      %v1732 = vsel %vm395, 0.0, %v1690
      %v1733 = vsel %vm395, 0.0, %v1693
      %v1734 = vsel %vm395, %v1667, 0.0
      %v1735 = vsel %vm395, %v1670, 0.0
      %v1736 = vsel %vm395, %v1673, 0.0
      %v1737 = vsel %vm395, %v1676, 0.0
      %v1738 = vsel %vm395, %v1679, 0.0
      %v1739 = vsel %vm395, %v1682, 0.0
      %v1740 = vsel %vm395, %v1685, 0.0
      %v1741 = vsel %vm395, %v1688, 0.0
      %v1742 = vsel %vm395, %v1691, 0.0
      %v1743 = vsel %vm395, %v1694, 0.0
      %v1760 = vrot.slane %v1724, 1
      %v1761 = vrot.slane %v1668, 1
      %v1762 = vsel %vm510, %v1760, %v1761
      %v1763 = vrot.slane %v1734, 1
      %v1764 = vsel %vm510, %v1761, %v1763
      %v1765 = vrot.slane %v1725, 1
      %v1766 = vrot.slane %v1671, 1
      %v1767 = vsel %vm510, %v1765, %v1766
      %v1768 = vrot.slane %v1735, 1
      %v1769 = vsel %vm510, %v1766, %v1768
      %v1770 = vrot.slane %v1726, 1
      %v1771 = vrot.slane %v1674, 1
      %v1772 = vsel %vm510, %v1770, %v1771
      %v1773 = vrot.slane %v1736, 1
      %v1774 = vsel %vm510, %v1771, %v1773
      %v1775 = vrot.slane %v1727, 1
      %v1776 = vrot.slane %v1677, 1
      %v1777 = vsel %vm510, %v1775, %v1776
      %v1778 = vrot.slane %v1737, 1
      %v1779 = vsel %vm510, %v1776, %v1778
      %v1780 = vrot.slane %v1728, 1
      %v1781 = vrot.slane %v1680, 1
      %v1782 = vsel %vm510, %v1780, %v1781
      %v1783 = vrot.slane %v1738, 1
      %v1784 = vsel %vm510, %v1781, %v1783
      %v1785 = vrot.slane %v1729, 1
      %v1786 = vrot.slane %v1683, 1
      %v1787 = vsel %vm510, %v1785, %v1786
      %v1788 = vrot.slane %v1739, 1
      %v1789 = vsel %vm510, %v1786, %v1788
      %v1790 = vrot.slane %v1730, 1
      %v1791 = vrot.slane %v1686, 1
      %v1792 = vsel %vm510, %v1790, %v1791
      %v1793 = vrot.slane %v1740, 1
      %v1794 = vsel %vm510, %v1791, %v1793
      %v1795 = vrot.slane %v1731, 1
      %v1796 = vrot.slane %v1689, 1
      %v1797 = vsel %vm510, %v1795, %v1796
      %v1798 = vrot.slane %v1741, 1
      %v1799 = vsel %vm510, %v1796, %v1798
      %1800 = vrot.lane.b32.xlu0 %v1762, 4
      %v1801 = vpop.permute.xlu0 %1800
      %1802 = vrot.lane.b32.xlu0 %v1764, 4
      %v1803 = vpop.permute.xlu0 %1802
      %1804 = vrot.lane.b32.xlu0 %v1767, 4
      %v1805 = vpop.permute.xlu0 %1804
      %1806 = vrot.lane.b32.xlu0 %v1769, 4
      %v1807 = vpop.permute.xlu0 %1806
      %1808 = vrot.lane.b32.xlu0 %v1772, 4
      %v1809 = vpop.permute.xlu0 %1808
      %1810 = vrot.lane.b32.xlu0 %v1774, 4
      %v1811 = vpop.permute.xlu0 %1810
      %1812 = vrot.lane.b32.xlu0 %v1777, 4
      %v1813 = vpop.permute.xlu0 %1812
      %1814 = vrot.lane.b32.xlu0 %v1779, 4
      %v1815 = vpop.permute.xlu0 %1814
      %1816 = vrot.lane.b32.xlu0 %v1782, 4
      %v1817 = vpop.permute.xlu0 %1816
      %1818 = vrot.lane.b32.xlu0 %v1784, 4
      %v1819 = vpop.permute.xlu0 %1818
      %1820 = vrot.lane.b32.xlu0 %v1787, 4
      %v1821 = vpop.permute.xlu0 %1820
      %1822 = vrot.lane.b32.xlu0 %v1789, 4
      %v1823 = vpop.permute.xlu0 %1822
      %1824 = vrot.lane.b32.xlu0 %v1792, 4
      %v1825 = vpop.permute.xlu0 %1824
      %1826 = vrot.lane.b32.xlu0 %v1794, 4
      %v1827 = vpop.permute.xlu0 %1826
      %1828 = vrot.lane.b32.xlu0 %v1797, 4
      %v1829 = vpop.permute.xlu0 %1828
      %1830 = vrot.lane.b32.xlu0 %v1799, 4
      %v1831 = vpop.permute.xlu0 %1830
      %v1848 = vrot.slane %v1724, 2
      %v1849 = vrot.slane %v1668, 2
      %v1850 = vsel %vm621, %v1848, %v1849
      %v1851 = vrot.slane %v1734, 2
      %v1852 = vsel %vm621, %v1849, %v1851
      %v1853 = vrot.slane %v1725, 2
      %v1854 = vrot.slane %v1671, 2
      %v1855 = vsel %vm621, %v1853, %v1854
      %v1856 = vrot.slane %v1735, 2
      %v1857 = vsel %vm621, %v1854, %v1856
      %v1858 = vrot.slane %v1726, 2
      %v1859 = vrot.slane %v1674, 2
      %v1860 = vsel %vm621, %v1858, %v1859
      %v1861 = vrot.slane %v1736, 2
      %v1862 = vsel %vm621, %v1859, %v1861
      %v1863 = vrot.slane %v1727, 2
      %v1864 = vrot.slane %v1677, 2
      %v1865 = vsel %vm621, %v1863, %v1864
      %v1866 = vrot.slane %v1737, 2
      %v1867 = vsel %vm621, %v1864, %v1866
      %v1868 = vrot.slane %v1728, 2
      %v1869 = vrot.slane %v1680, 2
      %v1870 = vsel %vm621, %v1868, %v1869
      %v1871 = vrot.slane %v1738, 2
      %v1872 = vsel %vm621, %v1869, %v1871
      %v1873 = vrot.slane %v1729, 2
      %v1874 = vrot.slane %v1683, 2
      %v1875 = vsel %vm621, %v1873, %v1874
      %v1876 = vrot.slane %v1739, 2
      %v1877 = vsel %vm621, %v1874, %v1876
      %v1878 = vrot.slane %v1730, 2
      %v1879 = vrot.slane %v1686, 2
      %v1880 = vsel %vm621, %v1878, %v1879
      %v1881 = vrot.slane %v1740, 2
      %v1882 = vsel %vm621, %v1879, %v1881
      %v1883 = vrot.slane %v1731, 2
      %v1884 = vrot.slane %v1689, 2
      %v1885 = vsel %vm621, %v1883, %v1884
      %v1886 = vrot.slane %v1741, 2
      %v1887 = vsel %vm621, %v1884, %v1886
      %1888 = vrot.lane.b32.xlu0 %v1850, 8
      %v1889 = vpop.permute.xlu0 %1888
      %1890 = vrot.lane.b32.xlu0 %v1852, 8
      %v1891 = vpop.permute.xlu0 %1890
      %1892 = vrot.lane.b32.xlu0 %v1855, 8
      %v1893 = vpop.permute.xlu0 %1892
      %1894 = vrot.lane.b32.xlu0 %v1857, 8
      %v1895 = vpop.permute.xlu0 %1894
      %1896 = vrot.lane.b32.xlu0 %v1860, 8
      %v1897 = vpop.permute.xlu0 %1896
      %1898 = vrot.lane.b32.xlu0 %v1862, 8
      %v1899 = vpop.permute.xlu0 %1898
      %1900 = vrot.lane.b32.xlu0 %v1865, 8
      %v1901 = vpop.permute.xlu0 %1900
      %1902 = vrot.lane.b32.xlu0 %v1867, 8
      %v1903 = vpop.permute.xlu0 %1902
      %1904 = vrot.lane.b32.xlu0 %v1870, 8
      %v1905 = vpop.permute.xlu0 %1904
      %1906 = vrot.lane.b32.xlu0 %v1872, 8
      %v1907 = vpop.permute.xlu0 %1906
      %1908 = vrot.lane.b32.xlu0 %v1875, 8
      %v1909 = vpop.permute.xlu0 %1908
      %1910 = vrot.lane.b32.xlu0 %v1877, 8
      %v1911 = vpop.permute.xlu0 %1910
      %1912 = vrot.lane.b32.xlu0 %v1880, 8
      %v1913 = vpop.permute.xlu0 %1912
      %1914 = vrot.lane.b32.xlu0 %v1882, 8
      %v1915 = vpop.permute.xlu0 %1914
      %1916 = vrot.lane.b32.xlu0 %v1885, 8
      %v1917 = vpop.permute.xlu0 %1916
      %1918 = vrot.lane.b32.xlu0 %v1887, 8
      %v1919 = vpop.permute.xlu0 %1918
      %1937 = vrot.lane.b32.xlu0 %v1725, 12
      %v1938 = vpop.permute.xlu0 %1937
      %1939 = vrot.lane.b32.xlu0 %v1671, 12
      %v1940 = vpop.permute.xlu0 %1939
      %1941 = vrot.lane.b32.xlu0 %v1726, 12
      %v1942 = vpop.permute.xlu0 %1941
      %1943 = vrot.lane.b32.xlu0 %v1674, 12
      %v1944 = vpop.permute.xlu0 %1943
      %1945 = vrot.lane.b32.xlu0 %v1727, 12
      %v1946 = vpop.permute.xlu0 %1945
      %1947 = vrot.lane.b32.xlu0 %v1677, 12
      %v1948 = vpop.permute.xlu0 %1947
      %1949 = vrot.lane.b32.xlu0 %v1728, 12
      %v1950 = vpop.permute.xlu0 %1949
      %1951 = vrot.lane.b32.xlu0 %v1680, 12
      %v1952 = vpop.permute.xlu0 %1951
      %1953 = vrot.lane.b32.xlu0 %v1729, 12
      %v1954 = vpop.permute.xlu0 %1953
      %1955 = vrot.lane.b32.xlu0 %v1683, 12
      %v1956 = vpop.permute.xlu0 %1955
      %1957 = vrot.lane.b32.xlu0 %v1730, 12
      %v1958 = vpop.permute.xlu0 %1957
      %1959 = vrot.lane.b32.xlu0 %v1686, 12
      %v1960 = vpop.permute.xlu0 %1959
      %1961 = vrot.lane.b32.xlu0 %v1731, 12
      %v1962 = vpop.permute.xlu0 %1961
      %1963 = vrot.lane.b32.xlu0 %v1689, 12
      %v1964 = vpop.permute.xlu0 %1963
      %1965 = vrot.lane.b32.xlu0 %v1732, 12
      %v1966 = vpop.permute.xlu0 %1965
      %1967 = vrot.lane.b32.xlu0 %v1692, 12
      %v1968 = vpop.permute.xlu0 %1967
      %v1986 = vrot.slane %v1732, 1
      %v1987 = vrot.slane %v1692, 1
      %v1988 = vsel %vm510, %v1986, %v1987
      %v1989 = vrot.slane %v1742, 1
      %v1990 = vsel %vm510, %v1987, %v1989
      %1991 = vrot.lane.b32.xlu0 %v1767, 16
      %v1992 = vpop.permute.xlu0 %1991
      %1993 = vrot.lane.b32.xlu0 %v1769, 16
      %v1994 = vpop.permute.xlu0 %1993
      %1995 = vrot.lane.b32.xlu0 %v1772, 16
      %v1996 = vpop.permute.xlu0 %1995
      %1997 = vrot.lane.b32.xlu0 %v1774, 16
      %v1998 = vpop.permute.xlu0 %1997
      %1999 = vrot.lane.b32.xlu0 %v1777, 16
      %v2000 = vpop.permute.xlu0 %1999
      %2001 = vrot.lane.b32.xlu0 %v1779, 16
      %v2002 = vpop.permute.xlu0 %2001
      %2003 = vrot.lane.b32.xlu0 %v1782, 16
      %v2004 = vpop.permute.xlu0 %2003
      %2005 = vrot.lane.b32.xlu0 %v1784, 16
      %v2006 = vpop.permute.xlu0 %2005
      %2007 = vrot.lane.b32.xlu0 %v1787, 16
      %v2008 = vpop.permute.xlu0 %2007
      %2009 = vrot.lane.b32.xlu0 %v1789, 16
      %v2010 = vpop.permute.xlu0 %2009
      %2011 = vrot.lane.b32.xlu0 %v1792, 16
      %v2012 = vpop.permute.xlu0 %2011
      %2013 = vrot.lane.b32.xlu0 %v1794, 16
      %v2014 = vpop.permute.xlu0 %2013
      %2015 = vrot.lane.b32.xlu0 %v1797, 16
      %v2016 = vpop.permute.xlu0 %2015
      %2017 = vrot.lane.b32.xlu0 %v1799, 16
      %v2018 = vpop.permute.xlu0 %2017
      %2019 = vrot.lane.b32.xlu0 %v1988, 16
      %v2020 = vpop.permute.xlu0 %2019
      %2021 = vrot.lane.b32.xlu0 %v1990, 16
      %v2022 = vpop.permute.xlu0 %2021
      %v2039 = vrot.slane %v1732, 2
      %v2040 = vrot.slane %v1692, 2
      %v2041 = vsel %vm621, %v2039, %v2040
      %v2042 = vrot.slane %v1742, 2
      %v2043 = vsel %vm621, %v2040, %v2042
      %2044 = vrot.lane.b32.xlu0 %v1855, 20
      %v2045 = vpop.permute.xlu0 %2044
      %2046 = vrot.lane.b32.xlu0 %v1857, 20
      %v2047 = vpop.permute.xlu0 %2046
      %2048 = vrot.lane.b32.xlu0 %v1860, 20
      %v2049 = vpop.permute.xlu0 %2048
      %2050 = vrot.lane.b32.xlu0 %v1862, 20
      %v2051 = vpop.permute.xlu0 %2050
      %2052 = vrot.lane.b32.xlu0 %v1865, 20
      %v2053 = vpop.permute.xlu0 %2052
      %2054 = vrot.lane.b32.xlu0 %v1867, 20
      %v2055 = vpop.permute.xlu0 %2054
      %2056 = vrot.lane.b32.xlu0 %v1870, 20
      %v2057 = vpop.permute.xlu0 %2056
      %2058 = vrot.lane.b32.xlu0 %v1872, 20
      %v2059 = vpop.permute.xlu0 %2058
      %2060 = vrot.lane.b32.xlu0 %v1875, 20
      %v2061 = vpop.permute.xlu0 %2060
      %2062 = vrot.lane.b32.xlu0 %v1877, 20
      %v2063 = vpop.permute.xlu0 %2062
      %2064 = vrot.lane.b32.xlu0 %v1880, 20
      %v2065 = vpop.permute.xlu0 %2064
      %2066 = vrot.lane.b32.xlu0 %v1882, 20
      %v2067 = vpop.permute.xlu0 %2066
      %2068 = vrot.lane.b32.xlu0 %v1885, 20
      %v2069 = vpop.permute.xlu0 %2068
      %2070 = vrot.lane.b32.xlu0 %v1887, 20
      %v2071 = vpop.permute.xlu0 %2070
      %2072 = vrot.lane.b32.xlu0 %v2041, 20
      %v2073 = vpop.permute.xlu0 %2072
      %2074 = vrot.lane.b32.xlu0 %v2043, 20
      %v2075 = vpop.permute.xlu0 %2074
      %2093 = vrot.lane.b32.xlu0 %v1726, 24
      %v2094 = vpop.permute.xlu0 %2093
      %2095 = vrot.lane.b32.xlu0 %v1674, 24
      %v2096 = vpop.permute.xlu0 %2095
      %2097 = vrot.lane.b32.xlu0 %v1727, 24
      %v2098 = vpop.permute.xlu0 %2097
      %2099 = vrot.lane.b32.xlu0 %v1677, 24
      %v2100 = vpop.permute.xlu0 %2099
      %2101 = vrot.lane.b32.xlu0 %v1728, 24
      %v2102 = vpop.permute.xlu0 %2101
      %2103 = vrot.lane.b32.xlu0 %v1680, 24
      %v2104 = vpop.permute.xlu0 %2103
      %2105 = vrot.lane.b32.xlu0 %v1729, 24
      %v2106 = vpop.permute.xlu0 %2105
      %2107 = vrot.lane.b32.xlu0 %v1683, 24
      %v2108 = vpop.permute.xlu0 %2107
      %2109 = vrot.lane.b32.xlu0 %v1730, 24
      %v2110 = vpop.permute.xlu0 %2109
      %2111 = vrot.lane.b32.xlu0 %v1686, 24
      %v2112 = vpop.permute.xlu0 %2111
      %2113 = vrot.lane.b32.xlu0 %v1731, 24
      %v2114 = vpop.permute.xlu0 %2113
      %2115 = vrot.lane.b32.xlu0 %v1689, 24
      %v2116 = vpop.permute.xlu0 %2115
      %2117 = vrot.lane.b32.xlu0 %v1732, 24
      %v2118 = vpop.permute.xlu0 %2117
      %2119 = vrot.lane.b32.xlu0 %v1692, 24
      %v2120 = vpop.permute.xlu0 %2119
      %2121 = vrot.lane.b32.xlu0 %v1733, 24
      %v2122 = vpop.permute.xlu0 %2121
      %2123 = vrot.lane.b32.xlu0 %v1695, 24
      %v2124 = vpop.permute.xlu0 %2123
      %v2142 = vrot.slane %v1733, 1
      %v2143 = vrot.slane %v1695, 1
      %v2144 = vsel %vm510, %v2142, %v2143
      %v2145 = vrot.slane %v1743, 1
      %v2146 = vsel %vm510, %v2143, %v2145
      %2147 = vrot.lane.b32.xlu0 %v1772, 28
      %v2148 = vpop.permute.xlu0 %2147
      %2149 = vrot.lane.b32.xlu0 %v1774, 28
      %v2150 = vpop.permute.xlu0 %2149
      %2151 = vrot.lane.b32.xlu0 %v1777, 28
      %v2152 = vpop.permute.xlu0 %2151
      %2153 = vrot.lane.b32.xlu0 %v1779, 28
      %v2154 = vpop.permute.xlu0 %2153
      %2155 = vrot.lane.b32.xlu0 %v1782, 28
      %v2156 = vpop.permute.xlu0 %2155
      %2157 = vrot.lane.b32.xlu0 %v1784, 28
      %v2158 = vpop.permute.xlu0 %2157
      %2159 = vrot.lane.b32.xlu0 %v1787, 28
      %v2160 = vpop.permute.xlu0 %2159
      %2161 = vrot.lane.b32.xlu0 %v1789, 28
      %v2162 = vpop.permute.xlu0 %2161
      %2163 = vrot.lane.b32.xlu0 %v1792, 28
      %v2164 = vpop.permute.xlu0 %2163
      %2165 = vrot.lane.b32.xlu0 %v1794, 28
      %v2166 = vpop.permute.xlu0 %2165
      %2167 = vrot.lane.b32.xlu0 %v1797, 28
      %v2168 = vpop.permute.xlu0 %2167
      %2169 = vrot.lane.b32.xlu0 %v1799, 28
      %v2170 = vpop.permute.xlu0 %2169
      %2171 = vrot.lane.b32.xlu0 %v1988, 28
      %v2172 = vpop.permute.xlu0 %2171
      %2173 = vrot.lane.b32.xlu0 %v1990, 28
      %v2174 = vpop.permute.xlu0 %2173
      %2175 = vrot.lane.b32.xlu0 %v2144, 28
      %v2176 = vpop.permute.xlu0 %2175
      %2177 = vrot.lane.b32.xlu0 %v2146, 28
      %v2178 = vpop.permute.xlu0 %2177
      %v2195 = vrot.slane %v1733, 2
      %v2196 = vrot.slane %v1695, 2
      %v2197 = vsel %vm621, %v2195, %v2196
      %v2198 = vrot.slane %v1743, 2
      %v2199 = vsel %vm621, %v2196, %v2198
      %2200 = vrot.lane.b32.xlu0 %v1860, 32
      %v2201 = vpop.permute.xlu0 %2200
      %2202 = vrot.lane.b32.xlu0 %v1862, 32
      %v2203 = vpop.permute.xlu0 %2202
      %2204 = vrot.lane.b32.xlu0 %v1865, 32
      %v2205 = vpop.permute.xlu0 %2204
      %2206 = vrot.lane.b32.xlu0 %v1867, 32
      %v2207 = vpop.permute.xlu0 %2206
      %2208 = vrot.lane.b32.xlu0 %v1870, 32
      %v2209 = vpop.permute.xlu0 %2208
      %2210 = vrot.lane.b32.xlu0 %v1872, 32
      %v2211 = vpop.permute.xlu0 %2210
      %2212 = vrot.lane.b32.xlu0 %v1875, 32
      %v2213 = vpop.permute.xlu0 %2212
      %2214 = vrot.lane.b32.xlu0 %v1877, 32
      %v2215 = vpop.permute.xlu0 %2214
      %2216 = vrot.lane.b32.xlu0 %v1880, 32
      %v2217 = vpop.permute.xlu0 %2216
      %2218 = vrot.lane.b32.xlu0 %v1882, 32
      %v2219 = vpop.permute.xlu0 %2218
      %2220 = vrot.lane.b32.xlu0 %v1885, 32
      %v2221 = vpop.permute.xlu0 %2220
      %2222 = vrot.lane.b32.xlu0 %v1887, 32
      %v2223 = vpop.permute.xlu0 %2222
      %2224 = vrot.lane.b32.xlu0 %v2041, 32
      %v2225 = vpop.permute.xlu0 %2224
      %2226 = vrot.lane.b32.xlu0 %v2043, 32
      %v2227 = vpop.permute.xlu0 %2226
      %2228 = vrot.lane.b32.xlu0 %v2197, 32
      %v2229 = vpop.permute.xlu0 %2228
      %2230 = vrot.lane.b32.xlu0 %v2199, 32
      %v2231 = vpop.permute.xlu0 %2230
      %v2248 = vsel %vm1116, %v1724, %v1801
      %v2249 = vsel %vm1116, %v1668, %v1803
      %v2250 = vsel %vm1116, %v1725, %v1805
      %v2251 = vsel %vm1116, %v1671, %v1807
      %v2252 = vsel %vm1116, %v1726, %v1809
      %v2253 = vsel %vm1116, %v1674, %v1811
      %v2254 = vsel %vm1116, %v1727, %v1813
      %v2255 = vsel %vm1116, %v1677, %v1815
      %v2256 = vsel %vm1116, %v1728, %v1817
      %v2257 = vsel %vm1116, %v1680, %v1819
      %v2258 = vsel %vm1116, %v1729, %v1821
      %v2259 = vsel %vm1116, %v1683, %v1823
      %v2260 = vsel %vm1116, %v1730, %v1825
      %v2261 = vsel %vm1116, %v1686, %v1827
      %v2262 = vsel %vm1116, %v1731, %v1829
      %v2263 = vsel %vm1116, %v1689, %v1831
      %v2264 = vsel %vm1137, %v2248, %v1889
      %v2265 = vsel %vm1137, %v2249, %v1891
      %v2266 = vsel %vm1137, %v2250, %v1893
      %v2267 = vsel %vm1137, %v2251, %v1895
      %v2268 = vsel %vm1137, %v2252, %v1897
      %v2269 = vsel %vm1137, %v2253, %v1899
      %v2270 = vsel %vm1137, %v2254, %v1901
      %v2271 = vsel %vm1137, %v2255, %v1903
      %v2272 = vsel %vm1137, %v2256, %v1905
      %v2273 = vsel %vm1137, %v2257, %v1907
      %v2274 = vsel %vm1137, %v2258, %v1909
      %v2275 = vsel %vm1137, %v2259, %v1911
      %v2276 = vsel %vm1137, %v2260, %v1913
      %v2277 = vsel %vm1137, %v2261, %v1915
      %v2278 = vsel %vm1137, %v2262, %v1917
      %v2279 = vsel %vm1137, %v2263, %v1919
      %v2280 = vsel %vm1158, %v2264, %v1938
      %v2281 = vsel %vm1158, %v2265, %v1940
      %v2282 = vsel %vm1158, %v2266, %v1942
      %v2283 = vsel %vm1158, %v2267, %v1944
      %v2284 = vsel %vm1158, %v2268, %v1946
      %v2285 = vsel %vm1158, %v2269, %v1948
      %v2286 = vsel %vm1158, %v2270, %v1950
      %v2287 = vsel %vm1158, %v2271, %v1952
      %v2288 = vsel %vm1158, %v2272, %v1954
      %v2289 = vsel %vm1158, %v2273, %v1956
      %v2290 = vsel %vm1158, %v2274, %v1958
      %v2291 = vsel %vm1158, %v2275, %v1960
      %v2292 = vsel %vm1158, %v2276, %v1962
      %v2293 = vsel %vm1158, %v2277, %v1964
      %v2294 = vsel %vm1158, %v2278, %v1966
      %v2295 = vsel %vm1158, %v2279, %v1968
      %v2296 = vsel %vm1179, %v2280, %v1992
      %v2297 = vsel %vm1179, %v2281, %v1994
      %v2298 = vsel %vm1179, %v2282, %v1996
      %v2299 = vsel %vm1179, %v2283, %v1998
      %v2300 = vsel %vm1179, %v2284, %v2000
      %v2301 = vsel %vm1179, %v2285, %v2002
      %v2302 = vsel %vm1179, %v2286, %v2004
      %v2303 = vsel %vm1179, %v2287, %v2006
      %v2304 = vsel %vm1179, %v2288, %v2008
      %v2305 = vsel %vm1179, %v2289, %v2010
      %v2306 = vsel %vm1179, %v2290, %v2012
      %v2307 = vsel %vm1179, %v2291, %v2014
      %v2308 = vsel %vm1179, %v2292, %v2016
      %v2309 = vsel %vm1179, %v2293, %v2018
      %v2310 = vsel %vm1179, %v2294, %v2020
      %v2311 = vsel %vm1179, %v2295, %v2022
      %v2312 = vsel %vm1200, %v2296, %v2045
      %v2313 = vsel %vm1200, %v2297, %v2047
      %v2314 = vsel %vm1200, %v2298, %v2049
      %v2315 = vsel %vm1200, %v2299, %v2051
      %v2316 = vsel %vm1200, %v2300, %v2053
      %v2317 = vsel %vm1200, %v2301, %v2055
      %v2318 = vsel %vm1200, %v2302, %v2057
      %v2319 = vsel %vm1200, %v2303, %v2059
      %v2320 = vsel %vm1200, %v2304, %v2061
      %v2321 = vsel %vm1200, %v2305, %v2063
      %v2322 = vsel %vm1200, %v2306, %v2065
      %v2323 = vsel %vm1200, %v2307, %v2067
      %v2324 = vsel %vm1200, %v2308, %v2069
      %v2325 = vsel %vm1200, %v2309, %v2071
      %v2326 = vsel %vm1200, %v2310, %v2073
      %v2327 = vsel %vm1200, %v2311, %v2075
      %v2328 = vsel %vm1221, %v2312, %v2094
      %v2329 = vsel %vm1221, %v2313, %v2096
      %v2330 = vsel %vm1221, %v2314, %v2098
      %v2331 = vsel %vm1221, %v2315, %v2100
      %v2332 = vsel %vm1221, %v2316, %v2102
      %v2333 = vsel %vm1221, %v2317, %v2104
      %v2334 = vsel %vm1221, %v2318, %v2106
      %v2335 = vsel %vm1221, %v2319, %v2108
      %v2336 = vsel %vm1221, %v2320, %v2110
      %v2337 = vsel %vm1221, %v2321, %v2112
      %v2338 = vsel %vm1221, %v2322, %v2114
      %v2339 = vsel %vm1221, %v2323, %v2116
      %v2340 = vsel %vm1221, %v2324, %v2118
      %v2341 = vsel %vm1221, %v2325, %v2120
      %v2342 = vsel %vm1221, %v2326, %v2122
      %v2343 = vsel %vm1221, %v2327, %v2124
      %v2344 = vsel %vm1242, %v2328, %v2148
      %v2345 = vsel %vm1242, %v2329, %v2150
      %v2346 = vsel %vm1242, %v2330, %v2152
      %v2347 = vsel %vm1242, %v2331, %v2154
      %v2348 = vsel %vm1242, %v2332, %v2156
      %v2349 = vsel %vm1242, %v2333, %v2158
      %v2350 = vsel %vm1242, %v2334, %v2160
      %v2351 = vsel %vm1242, %v2335, %v2162
      %v2352 = vsel %vm1242, %v2336, %v2164
      %v2353 = vsel %vm1242, %v2337, %v2166
      %v2354 = vsel %vm1242, %v2338, %v2168
      %v2355 = vsel %vm1242, %v2339, %v2170
      %v2356 = vsel %vm1242, %v2340, %v2172
      %v2357 = vsel %vm1242, %v2341, %v2174
      %v2358 = vsel %vm1242, %v2342, %v2176
      %v2359 = vsel %vm1242, %v2343, %v2178
      %v2360 = vsel %vm1263, %v2344, %v2201
      %v2361 = vsel %vm1263, %v2345, %v2203
      %v2362 = vsel %vm1263, %v2346, %v2205
      %v2363 = vsel %vm1263, %v2347, %v2207
      %v2364 = vsel %vm1263, %v2348, %v2209
      %v2365 = vsel %vm1263, %v2349, %v2211
      %v2366 = vsel %vm1263, %v2350, %v2213
      %v2367 = vsel %vm1263, %v2351, %v2215
      %v2368 = vsel %vm1263, %v2352, %v2217
      %v2369 = vsel %vm1263, %v2353, %v2219
      %v2370 = vsel %vm1263, %v2354, %v2221
      %v2371 = vsel %vm1263, %v2355, %v2223
      %v2372 = vsel %vm1263, %v2356, %v2225
      %v2373 = vsel %vm1263, %v2357, %v2227
      %v2374 = vsel %vm1263, %v2358, %v2229
      %v2375 = vsel %vm1263, %v2359, %v2231
      %v2377 = vlaneseq
      %v2378 = vshrl.u32 %v2377, 7
      %v2379 = vsub.s32 0, %v2378
      %v2380 = vrot.slane %v370, %v2379
      %v2383 = vsel %vm1290, %v2360, 0
      %v2386 = vsel %vm1290, %v2361, 0
      %v2389 = vsel %vm1290, %v2362, 0
      %v2392 = vsel %vm1290, %v2363, 0
      %v2395 = vsel %vm1290, %v2364, 0
      %v2398 = vsel %vm1290, %v2365, 0
      %v2401 = vsel %vm1290, %v2366, 0
      %v2404 = vsel %vm1290, %v2367, 0
      %v2407 = vsel %vm1290, %v2368, 0
      %v2410 = vsel %vm1290, %v2369, 0
      %v2413 = vsel %vm1290, %v2370, 0
      %v2416 = vsel %vm1290, %v2371, 0
      %v2419 = vsel %vm1290, %v2372, 0
      %v2422 = vsel %vm1290, %v2373, 0
      %v2425 = vsel %vm1290, %v2374, 0
      %v2428 = vsel %vm1290, %v2375, 0
      %v2431 = vsel %vm1351, %v368, 0
      %2433 = vmatprep.subr.mxu0 0.0
      %2434 = vmatpush1.msra.mxu0 %v364
      %2435 = vmatprep.subr.mxu0 0.0
      %2436 = vmatpush1.msra.mxu0 %v365
      %2437 = vmatprep.subr.mxu0 0.0
      %2438 = vmatpush1.msra.mxu0 %v366
      %2439 = vmatprep.subr.mxu0 0.0
      %2440 = vmatpush1.msra.mxu0 %v367
      %2441 = vmatprep.subr.mxu0 0.0
      %2442 = vmatpush1.msra.mxu0 %v2431
      %2443 = vmatprep.subr.mxu0 0.0
      %2444 = vmatpush1.msra.mxu0 0.0
      %2445 = vmatprep.subr.mxu0 0.0
      %2446 = vmatpush1.msra.mxu0 0.0
      %2447 = vmatprep.subr.mxu0 0.0
      %2448 = vmatpush1.msra.mxu0 0.0
      %2449 = vmatprep.subr.mxu0 0.0
      %2450 = vmatpush1.msra.mxu0 0.0
      %2451 = vmatprep.subr.mxu0 0.0
      %2452 = vmatpush1.msra.mxu0 0.0
      %2453 = vmatprep.subr.mxu0 0.0
      %2454 = vmatpush1.msra.mxu0 0.0
      %2455 = vmatprep.subr.mxu0 0.0
      %2456 = vmatpush1.msra.mxu0 0.0
      %2457 = vmatprep.subr.mxu0 0.0
      %2458 = vmatpush1.msra.mxu0 0.0
      %2459 = vmatprep.subr.mxu0 0.0
      %2460 = vmatpush1.msra.mxu0 0.0
      %2461 = vmatprep.subr.mxu0 0.0
      %2462 = vmatpush1.msra.mxu0 0.0
      %2463 = vmatprep.subr.mxu0 0.0
      %2464 = vmatpush1.msra.mxu0 0.0
      %2465 = vmatprep.subr.mxu0 0.0
      %2466 = vmatpush1.msra.mxu0 0.0
      %2467 = vmatprep.subr.mxu0 0.0
      %2468 = vmatpush1.msra.mxu0 0.0
      %2469 = vmatprep.subr.mxu0 0.0
      %2470 = vmatpush1.msra.mxu0 0.0
      %2471 = vmatprep.subr.mxu0 0.0
      %2472 = vmatpush1.msra.mxu0 0.0
      %2473 = vmatprep.subr.mxu0 0.0
      %2474 = vmatpush1.msra.mxu0 0.0
      %2475 = vmatprep.subr.mxu0 0.0
      %2476 = vmatpush1.msra.mxu0 0.0
      %2477 = vmatprep.subr.mxu0 0.0
      %2478 = vmatpush1.msra.mxu0 0.0
      %2479 = vmatprep.subr.mxu0 0.0
      %2480 = vmatpush1.msra.mxu0 0.0
      %2481 = vmatprep.subr.mxu0 0.0
      %2482 = vmatpush1.msra.mxu0 0.0
      %2483 = vmatprep.subr.mxu0 0.0
      %2484 = vmatpush1.msra.mxu0 0.0
      %2485 = vmatprep.subr.mxu0 0.0
      %2486 = vmatpush1.msra.mxu0 0.0
      %2487 = vmatprep.subr.mxu0 0.0
      %2488 = vmatpush1.msra.mxu0 0.0
      %2489 = vmatprep.subr.mxu0 0.0
      %2490 = vmatpush1.msra.mxu0 0.0
      %2491 = vmatprep.subr.mxu0 0.0
      %2492 = vmatpush1.msra.mxu0 0.0
      %2493 = vmatprep.subr.mxu0 0.0
      %2494 = vmatpush1.msra.mxu0 0.0
      %2495 = vmatprep.subr.mxu0 0.0
      %2496 = vmatpush1.msra.mxu0 0.0
      %2497 = vmatprep.mubr.f32.mxu0 0.0
      %2498 = vmatmul.mubr.f32.gmra.mrb[0].mxu0 %v2383
      %v2499 = vpop.f32.mrb[0].mxu0
      %v2500 = vadd.f32 %v2380, %v2499
      %v2501 = vpop.f32.mrb[0].mxu0
      %2502 = vmatprep.mubr.f32.mxu0 0.0
      %2503 = vmatmul.mubr.f32.gmra.mrb[0].mxu0 %v2386
      %v2504 = vpop.f32.mrb[0].mxu0
      %v2505 = vadd.f32 %v2380, %v2504
      %v2506 = vpop.f32.mrb[0].mxu0
      %2507 = vmatprep.mubr.f32.mxu0 0.0
      %2508 = vmatmul.mubr.f32.gmra.mrb[0].mxu0 %v2389
      %v2509 = vpop.f32.mrb[0].mxu0
      %v2510 = vadd.f32 %v2380, %v2509
      %v2511 = vpop.f32.mrb[0].mxu0
      %2512 = vmatprep.mubr.f32.mxu0 0.0
      %2513 = vmatmul.mubr.f32.gmra.mrb[0].mxu0 %v2392
      %v2514 = vpop.f32.mrb[0].mxu0
      %v2515 = vadd.f32 %v2380, %v2514
      %v2516 = vpop.f32.mrb[0].mxu0
      %2517 = vmatprep.mubr.f32.mxu0 0.0
      %2518 = vmatmul.mubr.f32.gmra.mrb[0].mxu0 %v2395
      %v2519 = vpop.f32.mrb[0].mxu0
      %v2520 = vadd.f32 %v2380, %v2519
      %v2521 = vpop.f32.mrb[0].mxu0
      %2522 = vmatprep.mubr.f32.mxu0 0.0
      %2523 = vmatmul.mubr.f32.gmra.mrb[0].mxu0 %v2398
      %v2524 = vpop.f32.mrb[0].mxu0
      %v2525 = vadd.f32 %v2380, %v2524
      %v2526 = vpop.f32.mrb[0].mxu0
      %2527 = vmatprep.mubr.f32.mxu0 0.0
      %2528 = vmatmul.mubr.f32.gmra.mrb[0].mxu0 %v2401
      %v2529 = vpop.f32.mrb[0].mxu0
      %v2530 = vadd.f32 %v2380, %v2529
      %v2531 = vpop.f32.mrb[0].mxu0
      %2532 = vmatprep.mubr.f32.mxu0 0.0
      %2533 = vmatmul.mubr.f32.gmra.mrb[0].mxu0 %v2404
      %v2534 = vpop.f32.mrb[0].mxu0
      %v2535 = vadd.f32 %v2380, %v2534
      %v2536 = vpop.f32.mrb[0].mxu0
      %2537 = vmatprep.mubr.f32.mxu0 0.0
      %2538 = vmatmul.mubr.f32.gmra.mrb[0].mxu0 %v2407
      %v2539 = vpop.f32.mrb[0].mxu0
      %v2540 = vadd.f32 %v2380, %v2539
      %v2541 = vpop.f32.mrb[0].mxu0
      %2542 = vmatprep.mubr.f32.mxu0 0.0
      %2543 = vmatmul.mubr.f32.gmra.mrb[0].mxu0 %v2410
      %v2544 = vpop.f32.mrb[0].mxu0
      %v2545 = vadd.f32 %v2380, %v2544
      %v2546 = vpop.f32.mrb[0].mxu0
      %2547 = vmatprep.mubr.f32.mxu0 0.0
      %2548 = vmatmul.mubr.f32.gmra.mrb[0].mxu0 %v2413
      %v2549 = vpop.f32.mrb[0].mxu0
      %v2550 = vadd.f32 %v2380, %v2549
      %v2551 = vpop.f32.mrb[0].mxu0
      %2552 = vmatprep.mubr.f32.mxu0 0.0
      %2553 = vmatmul.mubr.f32.gmra.mrb[0].mxu0 %v2416
      %v2554 = vpop.f32.mrb[0].mxu0
      %v2555 = vadd.f32 %v2380, %v2554
      %v2556 = vpop.f32.mrb[0].mxu0
      %2557 = vmatprep.mubr.f32.mxu0 0.0
      %2558 = vmatmul.mubr.f32.gmra.mrb[0].mxu0 %v2419
      %v2559 = vpop.f32.mrb[0].mxu0
      %v2560 = vadd.f32 %v2380, %v2559
      %v2561 = vpop.f32.mrb[0].mxu0
      %2562 = vmatprep.mubr.f32.mxu0 0.0
      %2563 = vmatmul.mubr.f32.gmra.mrb[0].mxu0 %v2422
      %v2564 = vpop.f32.mrb[0].mxu0
      %v2565 = vadd.f32 %v2380, %v2564
      %v2566 = vpop.f32.mrb[0].mxu0
      %2567 = vmatprep.mubr.f32.mxu0 0.0
      %2568 = vmatmul.mubr.f32.gmra.mrb[0].mxu0 %v2425
      %v2569 = vpop.f32.mrb[0].mxu0
      %v2570 = vadd.f32 %v2380, %v2569
      %v2571 = vpop.f32.mrb[0].mxu0
      %2572 = vmatprep.mubr.f32.mxu0 0.0
      %2573 = vmatmul.mubr.f32.gmra.mrb[0].mxu0 %v2428
      %v2574 = vpop.f32.mrb[0].mxu0
      %v2575 = vadd.f32 %v2380, %v2574
      %v2576 = vpop.f32.mrb[0].mxu0
      %2577 = vdwg.mxu0
      %v2578 = vadd.f32 %v335, %v2500
      %v2579 = vadd.f32 %v336, %v2505
      %v2580 = vadd.f32 %v337, %v2510
      %v2581 = vadd.f32 %v338, %v2515
      %v2582 = vadd.f32 %v339, %v2520
      %v2583 = vadd.f32 %v340, %v2525
      %v2584 = vadd.f32 %v341, %v2530
      %v2585 = vadd.f32 %v342, %v2535
      %v2586 = vadd.f32 %v343, %v2540
      %v2587 = vadd.f32 %v344, %v2545
      %v2588 = vadd.f32 %v345, %v2550
      %v2589 = vadd.f32 %v346, %v2555
      %v2590 = vadd.f32 %v347, %v2560
      %v2591 = vadd.f32 %v348, %v2565
      %v2592 = vadd.f32 %v349, %v2570
      %v2593 = vadd.f32 %v350, %v2575
      %v2594 = vmax.f32 %v2578, 0.0
      %v2595 = vmax.f32 %v2579, 0.0
      %v2596 = vmax.f32 %v2580, 0.0
      %v2597 = vmax.f32 %v2581, 0.0
      %v2598 = vmax.f32 %v2582, 0.0
      %v2599 = vmax.f32 %v2583, 0.0
      %v2600 = vmax.f32 %v2584, 0.0
      %v2601 = vmax.f32 %v2585, 0.0
      %v2602 = vmax.f32 %v2586, 0.0
      %v2603 = vmax.f32 %v2587, 0.0
      %v2604 = vmax.f32 %v2588, 0.0
      %v2605 = vmax.f32 %v2589, 0.0
      %v2606 = vmax.f32 %v2590, 0.0
      %v2607 = vmax.f32 %v2591, 0.0
      %v2608 = vmax.f32 %v2592, 0.0
      %v2609 = vmax.f32 %v2593, 0.0
      %2610 = vst.msk [vmem:[%s333] sm:$0xff] %vm1116, %v2594
      %2611 = vst.msk [vmem:[%s333 + $0x8] sm:$0xff] %vm1116, %v2595
      %2612 = vst.msk [vmem:[%s333 + $0x10] sm:$0xff] %vm1116, %v2596
      %2613 = vst.msk [vmem:[%s333 + $0x18] sm:$0xff] %vm1116, %v2597
      %2614 = vst.msk [vmem:[%s333 + $0x20] sm:$0xff] %vm1116, %v2598
      %2615 = vst.msk [vmem:[%s333 + $0x28] sm:$0xff] %vm1116, %v2599
      %2616 = vst.msk [vmem:[%s333 + $0x30] sm:$0xff] %vm1116, %v2600
      %2617 = vst.msk [vmem:[%s333 + $0x38] sm:$0xff] %vm1116, %v2601
      %2618 = vst.msk [vmem:[%s333 + $0x40] sm:$0xff] %vm1116, %v2602
      %2619 = vst.msk [vmem:[%s333 + $0x48] sm:$0xff] %vm1116, %v2603
      %2620 = vst.msk [vmem:[%s333 + $0x50] sm:$0xff] %vm1116, %v2604
      %2621 = vst.msk [vmem:[%s333 + $0x58] sm:$0xff] %vm1116, %v2605
      %2622 = vst.msk [vmem:[%s333 + $0x60] sm:$0xff] %vm1116, %v2606
      %2623 = vst.msk [vmem:[%s333 + $0x68] sm:$0xff] %vm1116, %v2607
      %2624 = vst.msk [vmem:[%s333 + $0x70] sm:$0xff] %vm1116, %v2608
      %2625 = vst.msk [vmem:[%s333 + $0x78] sm:$0xff] %vm1116, %v2609
      %s2626 = smul.u32 8, %s22
      %p2627 = scmp.lt.s32.totalorder %s21, 1
      %s2628 = scalar_select %p2627, %s21, 1
      %p2629 = scmp.lt.s32.totalorder %s2626, 15
      %s2630 = scalar_select %p2629, %s2626, 15
      %s2631 = smul.addr %s2630, 2
      %s2632 = smul.addr %s2628, 32
      %s2633 = sadd.s32 %s2631, %s2632
      %s2634 = smul.addr %s2633, 8
      %s2635 = scalar_lea.vmem %s6, %s2634
      // Predicated region
      $region45: #{tpu_custom_call.1} parent=43 // pred_check
        %p2636 = pneg %p189
      $region46: #{tpu_custom_call.1} parent=43 // pred_check_branch
        %2638 = sbr.rel (%p2636) target = $region48
      $region47: #{tpu_custom_call.1} parent=43 // pred_region
        %s2639 = smul.u32 8, %s22
      $region48: #{tpu_custom_call.1} parent=43 // pred_fallthru
        _
    $region44: #{tpu_custom_call.1} parent=5 // pred_fallthru
      _
    %p2640 = scmp.le.s32.totalorder 2, %s12
    // Predicated region
    $region49: #{tpu_custom_call.1} parent=5 // pred_check
      %p2641 = pneg %p2640
    $region50: #{tpu_custom_call.1} parent=5 // pred_check_branch
      %2643 = sbr.rel (%p2641) target = $region52
    $region51: #{tpu_custom_call.1} parent=5 // pred_region
      %s2644 = ssub.s32 %s12, 2
      // Predicated region
      $region53: #{tpu_custom_call.1} parent=51 // pred_check
        %p2645 = pneg %p195
      $region54: #{tpu_custom_call.1} parent=51 // pred_check_branch
        %2647 = sbr.rel (%p2645) target = $region56
      $region55: #{tpu_custom_call.1} parent=51 // pred_region
        %s2648 = smul.u32 8, %s24
        %p2649 = scmp.lt.s32.totalorder %s23, 1
        %s2650 = scalar_select %p2649, %s23, 1
        %p2651 = scmp.lt.s32.totalorder %s2648, 15
        %s2652 = scalar_select %p2651, %s2648, 15
        %s2653 = smul.addr %s2652, 2
        %s2654 = smul.addr %s2650, 32
        %s2655 = sadd.s32 %s2653, %s2654
        %s2656 = smul.addr %s2655, 8
        %s2657 = scalar_lea.vmem %s6, %s2656
      $region56: #{tpu_custom_call.1} parent=51 // pred_fallthru
        _
    $region52: #{tpu_custom_call.1} parent=5 // pred_fallthru
      _
  $region6: #{tpu_custom_call.1} parent=0 // loop_footer
    %s16 = sadd.s32 1, %s12
  $region7: #{tpu_custom_call.1} parent=0 // loop_footer_branch
    %11 = sbr.rel target = $region3
  $region8: #{tpu_custom_call.1} parent=0 // loop_exit
    _

</llo_original>
